<compile_context>
chip_gen: v6e
topology: v6e:2x2x1
jax: 0.10.0
libtpu: 0.0.40
codegen_flags: <defaults>
</compile_context>

<pallas_src>
import math
import functools

import jax
import jax.numpy as jnp
from jax.experimental import pallas as pl
from jax.experimental.pallas import tpu as pltpu


# ----------------------------- Pallas kernel ------------------------------- #

def _transformer_block_kernel(x_ref,
                              wqkv_ref, bqkv_ref,
                              wo_ref, bo_ref,
                              g1_ref, beta1_ref,
                              w1_ref, b1_ref, w2_ref, b2_ref,
                              g2_ref, beta2_ref,
                              o_ref,
                              ctx_ref,                     # VMEM scratch (block_b, L, E) f32
                              *, num_heads, block_b, seq, eps):
    E = o_ref.shape[-1]
    hd = E // num_heads

    x = x_ref[...]                                         # (block_b*L, E) f32
    x_bf = x.astype(jnp.bfloat16)

    # ---- fused QKV projection (q columns already scaled by 1/sqrt(hd)) ----
    qkv = jnp.dot(x_bf, wqkv_ref[...],
                  preferred_element_type=jnp.float32) + bqkv_ref[...]     # (block_b*L, 3E) f32
    qkv3 = qkv.reshape(block_b, seq, 3 * E)

    # ---- per-head attention, batched over the batch tile, heads written into scratch ----
    for h in range(num_heads):                             # static unroll, no concat
        lo = h * hd
        qh = qkv3[:, :, lo:lo + hd].astype(jnp.bfloat16)                  # (B, L, hd)
        kh = qkv3[:, :, E + lo:E + lo + hd].astype(jnp.bfloat16)
        vh = qkv3[:, :, 2 * E + lo:2 * E + lo + hd].astype(jnp.bfloat16)

        s = jnp.einsum("bld,bmd->blm", qh, kh,
                       preferred_element_type=jnp.float32)                # (B, L, L) f32
        s = s - jnp.max(s, axis=-1, keepdims=True)
        p = jnp.exp(s)
        denom = jnp.sum(p, axis=-1, keepdims=True)                        # (B, L, 1)
        pv = jnp.einsum("blm,bmd->bld", p.astype(jnp.bfloat16), vh,
                        preferred_element_type=jnp.float32)               # (B, L, hd)
        # normalize after PV (cheaper) and store this head's context directly
        ctx_ref[:, :, lo:lo + hd] = pv * pl.reciprocal(denom, approx=True)

    attn_in = ctx_ref[...].reshape(block_b * seq, E).astype(jnp.bfloat16)
    attn = jnp.dot(attn_in, wo_ref[...],
                   preferred_element_type=jnp.float32) + bo_ref[...]      # (block_b*L, E)

    # ---- residual + norm1 : forward is norm1(x + 2*attn) (dropout == identity) ----
    h2 = x + 2.0 * attn
    mu = jnp.mean(h2, axis=-1, keepdims=True)
    var = jnp.mean((h2 - mu) * (h2 - mu), axis=-1, keepdims=True)
    y = (h2 - mu) * jax.lax.rsqrt(var + eps) * g1_ref[...] + beta1_ref[...]

    # ---- feed-forward (no nonlinearity between linear1/linear2 in the reference module) ----
    ff = jnp.dot(y.astype(jnp.bfloat16), w1_ref[...],
                 preferred_element_type=jnp.float32) + b1_ref[...]        # (block_b*L, hidden)
    ff = jnp.dot(ff.astype(jnp.bfloat16), w2_ref[...],
                 preferred_element_type=jnp.float32) + b2_ref[...]        # (block_b*L, E)

    # ---- residual + norm2 + SiLU ----
    z = y + ff
    mu2 = jnp.mean(z, axis=-1, keepdims=True)
    var2 = jnp.mean((z - mu2) * (z - mu2), axis=-1, keepdims=True)
    z = (z - mu2) * jax.lax.rsqrt(var2 + eps) * g2_ref[...] + beta2_ref[...]
    o_ref[...] = (z * jax.nn.sigmoid(z)).astype(o_ref.dtype)


# --------------------------- kernel-side param prep -------------------------- #

def _prepare_kernel_params(p, num_heads):
    """Torch-style params -> fused/transposed, bf16 weights, scale folded into q."""
    E = p["out_proj_w"].shape[0]
    hidden = p["w1"].shape[0]
    hd = E // num_heads
    scale = 1.0 / math.sqrt(hd)

    w_in = p["in_proj_w"]                       # (3E, E), torch (out, in)
    b_in = p["in_proj_b"]                       # (3E,)
    wqkv_t = jnp.concatenate(
        [w_in[:E].T * scale, w_in[E:2 * E].T, w_in[2 * E:].T], axis=1)    # (E, 3E)
    bqkv = jnp.concatenate([b_in[:E] * scale, b_in[E:2 * E], b_in[2 * E:]]).reshape(1, 3 * E)

    f32 = jnp.float32
    bf16 = jnp.bfloat16
    return {
        "wqkv_t": wqkv_t.astype(bf16),
        "bqkv": bqkv.astype(f32),
        "wo_t": p["out_proj_w"].T.astype(bf16),
        "bo": p["out_proj_b"].reshape(1, E).astype(f32),
        "ln1_g": p["ln1_g"].reshape(1, E).astype(f32),
        "ln1_b": p["ln1_b"].reshape(1, E).astype(f32),
        "w1_t": p["w1"].T.astype(bf16),
        "b1": p["b1"].reshape(1, hidden).astype(f32),
        "w2_t": p["w2"].T.astype(bf16),
        "b2": p["b2"].reshape(1, E).astype(f32),
        "ln2_g": p["ln2_g"].reshape(1, E).astype(f32),
        "ln2_b": p["ln2_b"].reshape(1, E).astype(f32),
    }


# ------------------------------- wrapper ------------------------------------ #

def transformer_block(x, params, num_heads, eps=1e-5, block_b=None):
    """x: (seq, batch, embed) float32 (PyTorch nn.MultiheadAttention default layout)."""
    L, N, E = x.shape
    assert E % num_heads == 0, "embed_dim must be divisible by num_heads"
    hidden = params["w1"].shape[0]

    # Batch blocking: pick the largest block that still leaves >= 2 grid steps (v7x has 2 TCs).
    if block_b is None:
        block_b = 1 if N == 1 else max(d for d in range(1, N // 2 + 1) if N % d == 0)
    assert N % block_b == 0
    rows = block_b * L
    assert rows % 8 == 0 or rows == N * L, "block rows must be sublane-aligned"

    kp = _prepare_kernel_params(params, num_heads)

    # (L, N, E) -> (N, L, E) -> (N*L, E): batch-major lane-dense 2-D activation slab.
    # TODO(synk): if callers can provide batch-first input, drop this transpose (pure HBM traffic).
    x2d = jnp.transpose(x, (1, 0, 2)).reshape(N * L, E)

    def const(shape):
        return pl.BlockSpec(shape, lambda b: (0,) * len(shape))   # grid-invariant (weights/biases)

    in_specs = [
        pl.BlockSpec((rows, E), lambda b: (b, 0)),    # x slab (per batch-block)
        const((E, 3 * E)), const((1, 3 * E)),         # fused Wqkv^T (bf16), bqkv
        const((E, E)), const((1, E)),                 # Wo^T (bf16), bo
        const((1, E)), const((1, E)),                 # ln1 gamma / beta
        const((E, hidden)), const((1, hidden)),       # W1^T (bf16), b1
        const((hidden, E)), const((1, E)),            # W2^T (bf16), b2
        const((1, E)), const((1, E)),                 # ln2 gamma / beta
    ]

    H, hd = num_heads, E // num_heads
    weight_bytes = (E * 3 * E + E * E + 2 * E * hidden) * 2 + (3 * E + 6 * E + hidden) * 4
    cost = pl.CostEstimate(
        flops=(2 * N * L * E * 3 * E            # fused QKV
               + 4 * N * H * L * L * hd         # scores + PV
               + 2 * N * L * E * E              # out proj
               + 4 * N * L * E * hidden),       # FFN
        transcendentals=N * H * L * L + N * L * E + 2 * N * L + N * H * L,
        bytes_accessed=2 * N * L * E * 4 + weight_bytes,
    )

    kernel = functools.partial(_transformer_block_kernel, num_heads=num_heads,
                               block_b=block_b, seq=L, eps=eps)
    out = pl.pallas_call(
        kernel,
        grid=(N // block_b,),
        in_specs=in_specs,
        out_specs=pl.BlockSpec((rows, E), lambda b: (b, 0)),
        out_shape=jax.ShapeDtypeStruct((N * L, E), jnp.float32),
        scratch_shapes=[pltpu.VMEM((block_b, L, E), jnp.float32)],   # per-head context accumulator
        compiler_params=pltpu.CompilerParams(
            dimension_semantics=("parallel",),
            vmem_limit_bytes=32 * 1024 * 1024),
        cost_estimate=cost,
    )(x2d, kp["wqkv_t"], kp["bqkv"], kp["wo_t"], kp["bo"],
      kp["ln1_g"], kp["ln1_b"], kp["w1_t"], kp["b1"],
      kp["w2_t"], kp["b2"], kp["ln2_g"], kp["ln2_b"])

    return out.reshape(N, L, E).transpose(1, 0, 2)        # back to (seq, batch, embed)


# --------------------------- pure-JAX f32 reference -------------------------- #

def reference(x, p, num_heads, eps=1e-5):
    L, N, E = x.shape
    hd = E // num_heads
    scale = 1.0 / math.sqrt(hd)
    qkv = x @ p["in_proj_w"].T + p["in_proj_b"]
    q, k, v = jnp.split(qkv, 3, axis=-1)
    qh = q.reshape(L, N, num_heads, hd) * scale
    kh = k.reshape(L, N, num_heads, hd)
    vh = v.reshape(L, N, num_heads, hd)
    s = jnp.einsum("lnhd,mnhd->nhlm", qh, kh)
    a = jax.nn.softmax(s, axis=-1)
    o = jnp.einsum("nhlm,mnhd->lnhd", a, vh).reshape(L, N, E)
    attn = o @ p["out_proj_w"].T + p["out_proj_b"]
    h2 = x + 2.0 * attn                                   # dropout == identity (eval mode)
    mu = h2.mean(-1, keepdims=True)
    var = ((h2 - mu) ** 2).mean(-1, keepdims=True)
    y = (h2 - mu) / jnp.sqrt(var + eps) * p["ln1_g"] + p["ln1_b"]
    ff = (y @ p["w1"].T + p["b1"]) @ p["w2"].T + p["b2"]
    z = y + ff
    mu2 = z.mean(-1, keepdims=True)
    var2 = ((z - mu2) ** 2).mean(-1, keepdims=True)
    z = (z - mu2) / jnp.sqrt(var2 + eps) * p["ln2_g"] + p["ln2_b"]
    return z * jax.nn.sigmoid(z)


# ------------------------------ parameter init ------------------------------- #

def init_params(key, embed, hidden):
    ks = jax.random.split(key, 8)
    s = 0.1
    return {
        "in_proj_w": jax.random.normal(ks[0], (3 * embed, embed), jnp.float32) * s,
        "in_proj_b": jax.random.normal(ks[1], (3 * embed,), jnp.float32) * s,
        "out_proj_w": jax.random.normal(ks[2], (embed, embed), jnp.float32) * s,
        "out_proj_b": jax.random.normal(ks[3], (embed,), jnp.float32) * s,
        "w1": jax.random.normal(ks[4], (hidden, embed), jnp.float32) * s,   # torch (out, in)
        "b1": jax.random.normal(ks[5], (hidden,), jnp.float32) * s,
        "w2": jax.random.normal(ks[6], (embed, hidden), jnp.float32) * s,
        "b2": jax.random.normal(ks[7], (embed,), jnp.float32) * s,
        "ln1_g": jnp.ones((embed,), jnp.float32),
        "ln1_b": jnp.zeros((embed,), jnp.float32),
        "ln2_g": jnp.ones((embed,), jnp.float32),
        "ln2_b": jnp.zeros((embed,), jnp.float32),
    }


if __name__ == "__main__":
    SEQ, BATCH, EMBED, HEADS, HIDDEN = 8, 2, 32, 4, 64
    key = jax.random.PRNGKey(0)
    kx, kparams = jax.random.split(key)
    x = jax.random.normal(kx, (SEQ, BATCH, EMBED), jnp.float32)   # (seq, batch, embed)
    params = init_params(kparams, EMBED, HIDDEN)

    out = jax.block_until_ready(transformer_block(x, params, HEADS))
    ref = reference(x, params, HEADS)

    assert out.shape == (SEQ, BATCH, EMBED)
    max_err = float(jnp.max(jnp.abs(out - ref)))
    # bf16 MXU operands (f32 accumulation) vs. a pure-f32 reference -> relaxed tolerance.
    assert max_err < 5e-2, f"max abs error {max_err}"
    print("KERNEL_OK")
</pallas_src>

<mosaic_0001>
module attributes {stable_mosaic.version = 11 : i64} {
  func.func @_transformer_block_kernel(%arg0: i32, %arg1: memref<8x32xf32, #tpu.memory_space<vmem>>, %arg2: memref<32x96xbf16, #tpu.memory_space<vmem>>, %arg3: memref<1x96xf32, #tpu.memory_space<vmem>>, %arg4: memref<32x32xbf16, #tpu.memory_space<vmem>>, %arg5: memref<1x32xf32, #tpu.memory_space<vmem>>, %arg6: memref<1x32xf32, #tpu.memory_space<vmem>>, %arg7: memref<1x32xf32, #tpu.memory_space<vmem>>, %arg8: memref<32x64xbf16, #tpu.memory_space<vmem>>, %arg9: memref<1x64xf32, #tpu.memory_space<vmem>>, %arg10: memref<64x32xbf16, #tpu.memory_space<vmem>>, %arg11: memref<1x32xf32, #tpu.memory_space<vmem>>, %arg12: memref<1x32xf32, #tpu.memory_space<vmem>>, %arg13: memref<1x32xf32, #tpu.memory_space<vmem>>, %arg14: memref<8x32xf32, #tpu.memory_space<vmem>>, %arg15: memref<1x8x32xf32, #tpu.memory_space<vmem>>) attributes {dimension_semantics = [#tpu.dimension_semantics<parallel>], iteration_bounds = array<i64: 2>, scalar_prefetch = 0 : i64, scratch_operands = 1 : i64, tpu.core_type = #tpu.core_type<tc>, window_params = [{transform_indices = @transform_0, window_bounds = array<i64: 8, 32>}, {pipeline_mode = #tpu.pipeline_mode<synchronous>, transform_indices = @transform_1, window_bounds = array<i64: 32, 96>}, {pipeline_mode = #tpu.pipeline_mode<synchronous>, transform_indices = @transform_2, window_bounds = array<i64: 1, 96>}, {pipeline_mode = #tpu.pipeline_mode<synchronous>, transform_indices = @transform_3, window_bounds = array<i64: 32, 32>}, {pipeline_mode = #tpu.pipeline_mode<synchronous>, transform_indices = @transform_4, window_bounds = array<i64: 1, 32>}, {pipeline_mode = #tpu.pipeline_mode<synchronous>, transform_indices = @transform_5, window_bounds = array<i64: 1, 32>}, {pipeline_mode = #tpu.pipeline_mode<synchronous>, transform_indices = @transform_6, window_bounds = array<i64: 1, 32>}, {pipeline_mode = #tpu.pipeline_mode<synchronous>, transform_indices = @transform_7, window_bounds = array<i64: 32, 64>}, {pipeline_mode = #tpu.pipeline_mode<synchronous>, transform_indices = @transform_8, window_bounds = array<i64: 1, 64>}, {pipeline_mode = #tpu.pipeline_mode<synchronous>, transform_indices = @transform_9, window_bounds = array<i64: 64, 32>}, {pipeline_mode = #tpu.pipeline_mode<synchronous>, transform_indices = @transform_10, window_bounds = array<i64: 1, 32>}, {pipeline_mode = #tpu.pipeline_mode<synchronous>, transform_indices = @transform_11, window_bounds = array<i64: 1, 32>}, {pipeline_mode = #tpu.pipeline_mode<synchronous>, transform_indices = @transform_12, window_bounds = array<i64: 1, 32>}, {transform_indices = @transform_13, window_bounds = array<i64: 8, 32>}]} {
    %c0 = arith.constant 0 : index
    %c0_0 = arith.constant 0 : index
    %0 = vector.load %arg1[%c0, %c0_0] : memref<8x32xf32, #tpu.memory_space<vmem>>, vector<8x32xf32>
    %1 = arith.truncf %0 : vector<8x32xf32> to vector<8x32xbf16>
    %c0_1 = arith.constant 0 : index
    %c0_2 = arith.constant 0 : index
    %2 = vector.load %arg2[%c0_1, %c0_2] : memref<32x96xbf16, #tpu.memory_space<vmem>>, vector<32x96xbf16>
    %cst = arith.constant dense<0.000000e+00> : vector<8x96xf32>
    %3 = tpu.matmul %1, %2, %cst {dimension_numbers = #tpu.dot_dimension_numbers<[1], [0], [0], [1], [0, 0, 1, 1], [], []>} : vector<8x32xbf16>, vector<32x96xbf16>, vector<8x96xf32> -> vector<8x96xf32>
    %c0_3 = arith.constant 0 : index
    %c0_4 = arith.constant 0 : index
    %4 = vector.load %arg3[%c0_3, %c0_4] : memref<1x96xf32, #tpu.memory_space<vmem>>, vector<1x96xf32>
    %5 = vector.broadcast %4 : vector<1x96xf32> to vector<8x96xf32>
    %6 = arith.addf %3, %5 : vector<8x96xf32>
    %7 = vector.shape_cast %6 : vector<8x96xf32> to vector<1x8x96xf32>
    %8 = vector.extract_strided_slice %7 {offsets = [0, 0, 0], sizes = [1, 8, 8], strides = [1, 1, 1]} : vector<1x8x96xf32> to vector<1x8x8xf32>
    %9 = arith.truncf %8 : vector<1x8x8xf32> to vector<1x8x8xbf16>
    %10 = vector.extract_strided_slice %7 {offsets = [0, 0, 32], sizes = [1, 8, 8], strides = [1, 1, 1]} : vector<1x8x96xf32> to vector<1x8x8xf32>
    %11 = arith.truncf %10 : vector<1x8x8xf32> to vector<1x8x8xbf16>
    %12 = vector.extract_strided_slice %7 {offsets = [0, 0, 64], sizes = [1, 8, 8], strides = [1, 1, 1]} : vector<1x8x96xf32> to vector<1x8x8xf32>
    %13 = arith.truncf %12 : vector<1x8x8xf32> to vector<1x8x8xbf16>
    "tpu.trace_start"() <{level = 10 : i32, message = "bld,bmd->blm"}> : () -> ()
    %cst_5 = arith.constant dense<0.000000e+00> : vector<1x8x8xf32>
    %14 = tpu.matmul %9, %11, %cst_5 {dimension_numbers = #tpu.dot_dimension_numbers<[2], [2], [1], [1], [0, 0, 0, 1, 1, 1], [0], [0]>} : vector<1x8x8xbf16>, vector<1x8x8xbf16>, vector<1x8x8xf32> -> vector<1x8x8xf32>
    "tpu.trace_stop"() : () -> ()
    %cst_6 = arith.constant dense<0xFF800000> : vector<1x8xf32>
    %15 = vector.multi_reduction <maximumf>, %14, %cst_6 [2] : vector<1x8x8xf32> to vector<1x8xf32>
    %16 = vector.shape_cast %15 : vector<1x8xf32> to vector<1x8x1xf32>
    %17 = vector.broadcast %16 : vector<1x8x1xf32> to vector<1x8x8xf32>
    %18 = arith.subf %14, %17 : vector<1x8x8xf32>
    %19 = math.exp %18 : vector<1x8x8xf32>
    %cst_7 = arith.constant dense<0.000000e+00> : vector<1x8xf32>
    %20 = vector.multi_reduction <add>, %19, %cst_7 [2] : vector<1x8x8xf32> to vector<1x8xf32>
    %21 = vector.shape_cast %20 : vector<1x8xf32> to vector<1x8x1xf32>
    %22 = arith.truncf %19 : vector<1x8x8xf32> to vector<1x8x8xbf16>
    "tpu.trace_start"() <{level = 10 : i32, message = "blm,bmd->bld"}> : () -> ()
    %cst_8 = arith.constant dense<0.000000e+00> : vector<1x8x8xf32>
    %23 = tpu.matmul %22, %13, %cst_8 {dimension_numbers = #tpu.dot_dimension_numbers<[2], [1], [1], [2], [0, 0, 0, 1, 1, 2], [0], [0]>} : vector<1x8x8xbf16>, vector<1x8x8xbf16>, vector<1x8x8xf32> -> vector<1x8x8xf32>
    "tpu.trace_stop"() : () -> ()
    %24 = tpu.reciprocal %21 {approx = true} : vector<1x8x1xf32> -> vector<1x8x1xf32>
    %25 = vector.broadcast %24 : vector<1x8x1xf32> to vector<1x8x8xf32>
    %26 = arith.mulf %23, %25 : vector<1x8x8xf32>
    %c0_9 = arith.constant 0 : index
    %c0_10 = arith.constant 0 : index
    %c0_11 = arith.constant 0 : index
    %27 = vector.load %arg15[%c0_9, %c0_10, %c0_11] : memref<1x8x32xf32, #tpu.memory_space<vmem>>, vector<1x8x8xf32>
    tpu.vector_store %arg15[%c0_9, %c0_10, %c0_11], %26 {strides = array<i32>} : memref<1x8x32xf32, #tpu.memory_space<vmem>>, vector<1x8x8xf32>,
    %28 = vector.extract_strided_slice %7 {offsets = [0, 0, 8], sizes = [1, 8, 8], strides = [1, 1, 1]} : vector<1x8x96xf32> to vector<1x8x8xf32>
    %29 = arith.truncf %28 : vector<1x8x8xf32> to vector<1x8x8xbf16>
    %30 = vector.extract_strided_slice %7 {offsets = [0, 0, 40], sizes = [1, 8, 8], strides = [1, 1, 1]} : vector<1x8x96xf32> to vector<1x8x8xf32>
    %31 = arith.truncf %30 : vector<1x8x8xf32> to vector<1x8x8xbf16>
    %32 = vector.extract_strided_slice %7 {offsets = [0, 0, 72], sizes = [1, 8, 8], strides = [1, 1, 1]} : vector<1x8x96xf32> to vector<1x8x8xf32>
    %33 = arith.truncf %32 : vector<1x8x8xf32> to vector<1x8x8xbf16>
    "tpu.trace_start"() <{level = 10 : i32, message = "bld,bmd->blm"}> : () -> ()
    %cst_12 = arith.constant dense<0.000000e+00> : vector<1x8x8xf32>
    %34 = tpu.matmul %29, %31, %cst_12 {dimension_numbers = #tpu.dot_dimension_numbers<[2], [2], [1], [1], [0, 0, 0, 1, 1, 1], [0], [0]>} : vector<1x8x8xbf16>, vector<1x8x8xbf16>, vector<1x8x8xf32> -> vector<1x8x8xf32>
    "tpu.trace_stop"() : () -> ()
    %cst_13 = arith.constant dense<0xFF800000> : vector<1x8xf32>
    %35 = vector.multi_reduction <maximumf>, %34, %cst_13 [2] : vector<1x8x8xf32> to vector<1x8xf32>
    %36 = vector.shape_cast %35 : vector<1x8xf32> to vector<1x8x1xf32>
    %37 = vector.broadcast %36 : vector<1x8x1xf32> to vector<1x8x8xf32>
    %38 = arith.subf %34, %37 : vector<1x8x8xf32>
    %39 = math.exp %38 : vector<1x8x8xf32>
    %cst_14 = arith.constant dense<0.000000e+00> : vector<1x8xf32>
    %40 = vector.multi_reduction <add>, %39, %cst_14 [2] : vector<1x8x8xf32> to vector<1x8xf32>
    %41 = vector.shape_cast %40 : vector<1x8xf32> to vector<1x8x1xf32>
    %42 = arith.truncf %39 : vector<1x8x8xf32> to vector<1x8x8xbf16>
    "tpu.trace_start"() <{level = 10 : i32, message = "blm,bmd->bld"}> : () -> ()
    %cst_15 = arith.constant dense<0.000000e+00> : vector<1x8x8xf32>
    %43 = tpu.matmul %42, %33, %cst_15 {dimension_numbers = #tpu.dot_dimension_numbers<[2], [1], [1], [2], [0, 0, 0, 1, 1, 2], [0], [0]>} : vector<1x8x8xbf16>, vector<1x8x8xbf16>, vector<1x8x8xf32> -> vector<1x8x8xf32>
    "tpu.trace_stop"() : () -> ()
    %44 = tpu.reciprocal %41 {approx = true} : vector<1x8x1xf32> -> vector<1x8x1xf32>
    %45 = vector.broadcast %44 : vector<1x8x1xf32> to vector<1x8x8xf32>
    %46 = arith.mulf %43, %45 : vector<1x8x8xf32>
    %c0_16 = arith.constant 0 : index
    %c0_17 = arith.constant 0 : index
    %c8 = arith.constant 8 : index
    %47 = vector.load %arg15[%c0_16, %c0_17, %c8] : memref<1x8x32xf32, #tpu.memory_space<vmem>>, vector<1x8x8xf32>
    tpu.vector_store %arg15[%c0_16, %c0_17, %c8], %46 {strides = array<i32>} : memref<1x8x32xf32, #tpu.memory_space<vmem>>, vector<1x8x8xf32>,
    %48 = vector.extract_strided_slice %7 {offsets = [0, 0, 16], sizes = [1, 8, 8], strides = [1, 1, 1]} : vector<1x8x96xf32> to vector<1x8x8xf32>
    %49 = arith.truncf %48 : vector<1x8x8xf32> to vector<1x8x8xbf16>
    %50 = vector.extract_strided_slice %7 {offsets = [0, 0, 48], sizes = [1, 8, 8], strides = [1, 1, 1]} : vector<1x8x96xf32> to vector<1x8x8xf32>
    %51 = arith.truncf %50 : vector<1x8x8xf32> to vector<1x8x8xbf16>
    %52 = vector.extract_strided_slice %7 {offsets = [0, 0, 80], sizes = [1, 8, 8], strides = [1, 1, 1]} : vector<1x8x96xf32> to vector<1x8x8xf32>
    %53 = arith.truncf %52 : vector<1x8x8xf32> to vector<1x8x8xbf16>
    "tpu.trace_start"() <{level = 10 : i32, message = "bld,bmd->blm"}> : () -> ()
    %cst_18 = arith.constant dense<0.000000e+00> : vector<1x8x8xf32>
    %54 = tpu.matmul %49, %51, %cst_18 {dimension_numbers = #tpu.dot_dimension_numbers<[2], [2], [1], [1], [0, 0, 0, 1, 1, 1], [0], [0]>} : vector<1x8x8xbf16>, vector<1x8x8xbf16>, vector<1x8x8xf32> -> vector<1x8x8xf32>
    "tpu.trace_stop"() : () -> ()
    %cst_19 = arith.constant dense<0xFF800000> : vector<1x8xf32>
    %55 = vector.multi_reduction <maximumf>, %54, %cst_19 [2] : vector<1x8x8xf32> to vector<1x8xf32>
    %56 = vector.shape_cast %55 : vector<1x8xf32> to vector<1x8x1xf32>
    %57 = vector.broadcast %56 : vector<1x8x1xf32> to vector<1x8x8xf32>
    %58 = arith.subf %54, %57 : vector<1x8x8xf32>
    %59 = math.exp %58 : vector<1x8x8xf32>
    %cst_20 = arith.constant dense<0.000000e+00> : vector<1x8xf32>
    %60 = vector.multi_reduction <add>, %59, %cst_20 [2] : vector<1x8x8xf32> to vector<1x8xf32>
    %61 = vector.shape_cast %60 : vector<1x8xf32> to vector<1x8x1xf32>
    %62 = arith.truncf %59 : vector<1x8x8xf32> to vector<1x8x8xbf16>
    "tpu.trace_start"() <{level = 10 : i32, message = "blm,bmd->bld"}> : () -> ()
    %cst_21 = arith.constant dense<0.000000e+00> : vector<1x8x8xf32>
    %63 = tpu.matmul %62, %53, %cst_21 {dimension_numbers = #tpu.dot_dimension_numbers<[2], [1], [1], [2], [0, 0, 0, 1, 1, 2], [0], [0]>} : vector<1x8x8xbf16>, vector<1x8x8xbf16>, vector<1x8x8xf32> -> vector<1x8x8xf32>
    "tpu.trace_stop"() : () -> ()
    %64 = tpu.reciprocal %61 {approx = true} : vector<1x8x1xf32> -> vector<1x8x1xf32>
    %65 = vector.broadcast %64 : vector<1x8x1xf32> to vector<1x8x8xf32>
    %66 = arith.mulf %63, %65 : vector<1x8x8xf32>
    %c0_22 = arith.constant 0 : index
    %c0_23 = arith.constant 0 : index
    %c16 = arith.constant 16 : index
    %67 = vector.load %arg15[%c0_22, %c0_23, %c16] : memref<1x8x32xf32, #tpu.memory_space<vmem>>, vector<1x8x8xf32>
    tpu.vector_store %arg15[%c0_22, %c0_23, %c16], %66 {strides = array<i32>} : memref<1x8x32xf32, #tpu.memory_space<vmem>>, vector<1x8x8xf32>,
    %68 = vector.extract_strided_slice %7 {offsets = [0, 0, 24], sizes = [1, 8, 8], strides = [1, 1, 1]} : vector<1x8x96xf32> to vector<1x8x8xf32>
    %69 = arith.truncf %68 : vector<1x8x8xf32> to vector<1x8x8xbf16>
    %70 = vector.extract_strided_slice %7 {offsets = [0, 0, 56], sizes = [1, 8, 8], strides = [1, 1, 1]} : vector<1x8x96xf32> to vector<1x8x8xf32>
    %71 = arith.truncf %70 : vector<1x8x8xf32> to vector<1x8x8xbf16>
    %72 = vector.extract_strided_slice %7 {offsets = [0, 0, 88], sizes = [1, 8, 8], strides = [1, 1, 1]} : vector<1x8x96xf32> to vector<1x8x8xf32>
    %73 = arith.truncf %72 : vector<1x8x8xf32> to vector<1x8x8xbf16>
    "tpu.trace_start"() <{level = 10 : i32, message = "bld,bmd->blm"}> : () -> ()
    %cst_24 = arith.constant dense<0.000000e+00> : vector<1x8x8xf32>
    %74 = tpu.matmul %69, %71, %cst_24 {dimension_numbers = #tpu.dot_dimension_numbers<[2], [2], [1], [1], [0, 0, 0, 1, 1, 1], [0], [0]>} : vector<1x8x8xbf16>, vector<1x8x8xbf16>, vector<1x8x8xf32> -> vector<1x8x8xf32>
    "tpu.trace_stop"() : () -> ()
    %cst_25 = arith.constant dense<0xFF800000> : vector<1x8xf32>
    %75 = vector.multi_reduction <maximumf>, %74, %cst_25 [2] : vector<1x8x8xf32> to vector<1x8xf32>
    %76 = vector.shape_cast %75 : vector<1x8xf32> to vector<1x8x1xf32>
    %77 = vector.broadcast %76 : vector<1x8x1xf32> to vector<1x8x8xf32>
    %78 = arith.subf %74, %77 : vector<1x8x8xf32>
    %79 = math.exp %78 : vector<1x8x8xf32>
    %cst_26 = arith.constant dense<0.000000e+00> : vector<1x8xf32>
    %80 = vector.multi_reduction <add>, %79, %cst_26 [2] : vector<1x8x8xf32> to vector<1x8xf32>
    %81 = vector.shape_cast %80 : vector<1x8xf32> to vector<1x8x1xf32>
    %82 = arith.truncf %79 : vector<1x8x8xf32> to vector<1x8x8xbf16>
    "tpu.trace_start"() <{level = 10 : i32, message = "blm,bmd->bld"}> : () -> ()
    %cst_27 = arith.constant dense<0.000000e+00> : vector<1x8x8xf32>
    %83 = tpu.matmul %82, %73, %cst_27 {dimension_numbers = #tpu.dot_dimension_numbers<[2], [1], [1], [2], [0, 0, 0, 1, 1, 2], [0], [0]>} : vector<1x8x8xbf16>, vector<1x8x8xbf16>, vector<1x8x8xf32> -> vector<1x8x8xf32>
    "tpu.trace_stop"() : () -> ()
    %84 = tpu.reciprocal %81 {approx = true} : vector<1x8x1xf32> -> vector<1x8x1xf32>
    %85 = vector.broadcast %84 : vector<1x8x1xf32> to vector<1x8x8xf32>
    %86 = arith.mulf %83, %85 : vector<1x8x8xf32>
    %c0_28 = arith.constant 0 : index
    %c0_29 = arith.constant 0 : index
    %c24 = arith.constant 24 : index
    %87 = vector.load %arg15[%c0_28, %c0_29, %c24] : memref<1x8x32xf32, #tpu.memory_space<vmem>>, vector<1x8x8xf32>
    tpu.vector_store %arg15[%c0_28, %c0_29, %c24], %86 {strides = array<i32>} : memref<1x8x32xf32, #tpu.memory_space<vmem>>, vector<1x8x8xf32>,
    %c0_30 = arith.constant 0 : index
    %c0_31 = arith.constant 0 : index
    %c0_32 = arith.constant 0 : index
    %88 = vector.load %arg15[%c0_30, %c0_31, %c0_32] : memref<1x8x32xf32, #tpu.memory_space<vmem>>, vector<1x8x32xf32>
    %89 = vector.shape_cast %88 : vector<1x8x32xf32> to vector<8x32xf32>
    %90 = arith.truncf %89 : vector<8x32xf32> to vector<8x32xbf16>
    %c0_33 = arith.constant 0 : index
    %c0_34 = arith.constant 0 : index
    %91 = vector.load %arg4[%c0_33, %c0_34] : memref<32x32xbf16, #tpu.memory_space<vmem>>, vector<32x32xbf16>
    %cst_35 = arith.constant dense<0.000000e+00> : vector<8x32xf32>
    %92 = tpu.matmul %90, %91, %cst_35 {dimension_numbers = #tpu.dot_dimension_numbers<[1], [0], [0], [1], [0, 0, 1, 1], [], []>} : vector<8x32xbf16>, vector<32x32xbf16>, vector<8x32xf32> -> vector<8x32xf32>
    %c0_36 = arith.constant 0 : index
    %c0_37 = arith.constant 0 : index
    %93 = vector.load %arg5[%c0_36, %c0_37] : memref<1x32xf32, #tpu.memory_space<vmem>>, vector<1x32xf32>
    %94 = vector.broadcast %93 : vector<1x32xf32> to vector<8x32xf32>
    %95 = arith.addf %92, %94 : vector<8x32xf32>
    %cst_38 = arith.constant 2.000000e+00 : f32
    %96 = vector.broadcast %cst_38 : f32 to vector<8x32xf32>
    %97 = arith.mulf %96, %95 : vector<8x32xf32>
    %98 = arith.addf %0, %97 : vector<8x32xf32>
    %cst_39 = arith.constant dense<0.000000e+00> : vector<8xf32>
    %99 = vector.multi_reduction <add>, %98, %cst_39 [1] : vector<8x32xf32> to vector<8xf32>
    %100 = vector.shape_cast %99 : vector<8xf32> to vector<8x1xf32>
    %cst_40 = arith.constant 3.200000e+01 : f32
    %101 = vector.broadcast %cst_40 : f32 to vector<8x1xf32>
    %102 = arith.divf %100, %101 : vector<8x1xf32>
    %103 = vector.broadcast %102 : vector<8x1xf32> to vector<8x32xf32>
    %104 = arith.subf %98, %103 : vector<8x32xf32>
    %105 = vector.broadcast %102 : vector<8x1xf32> to vector<8x32xf32>
    %106 = arith.subf %98, %105 : vector<8x32xf32>
    %107 = arith.mulf %104, %106 : vector<8x32xf32>
    %cst_41 = arith.constant dense<0.000000e+00> : vector<8xf32>
    %108 = vector.multi_reduction <add>, %107, %cst_41 [1] : vector<8x32xf32> to vector<8xf32>
    %109 = vector.shape_cast %108 : vector<8xf32> to vector<8x1xf32>
    %cst_42 = arith.constant 3.200000e+01 : f32
    %110 = vector.broadcast %cst_42 : f32 to vector<8x1xf32>
    %111 = arith.divf %109, %110 : vector<8x1xf32>
    %112 = vector.broadcast %102 : vector<8x1xf32> to vector<8x32xf32>
    %113 = arith.subf %98, %112 : vector<8x32xf32>
    %cst_43 = arith.constant 9.99999974E-6 : f32
    %114 = vector.broadcast %cst_43 : f32 to vector<8x1xf32>
    %115 = arith.addf %111, %114 : vector<8x1xf32>
    %116 = math.rsqrt %115 : vector<8x1xf32>
    %117 = vector.broadcast %116 : vector<8x1xf32> to vector<8x32xf32>
    %118 = arith.mulf %113, %117 : vector<8x32xf32>
    %c0_44 = arith.constant 0 : index
    %c0_45 = arith.constant 0 : index
    %119 = vector.load %arg6[%c0_44, %c0_45] : memref<1x32xf32, #tpu.memory_space<vmem>>, vector<1x32xf32>
    %120 = vector.broadcast %119 : vector<1x32xf32> to vector<8x32xf32>
    %121 = arith.mulf %118, %120 : vector<8x32xf32>
    %c0_46 = arith.constant 0 : index
    %c0_47 = arith.constant 0 : index
    %122 = vector.load %arg7[%c0_46, %c0_47] : memref<1x32xf32, #tpu.memory_space<vmem>>, vector<1x32xf32>
    %123 = vector.broadcast %122 : vector<1x32xf32> to vector<8x32xf32>
    %124 = arith.addf %121, %123 : vector<8x32xf32>
    %125 = arith.truncf %124 : vector<8x32xf32> to vector<8x32xbf16>
    %c0_48 = arith.constant 0 : index
    %c0_49 = arith.constant 0 : index
    %126 = vector.load %arg8[%c0_48, %c0_49] : memref<32x64xbf16, #tpu.memory_space<vmem>>, vector<32x64xbf16>
    %cst_50 = arith.constant dense<0.000000e+00> : vector<8x64xf32>
    %127 = tpu.matmul %125, %126, %cst_50 {dimension_numbers = #tpu.dot_dimension_numbers<[1], [0], [0], [1], [0, 0, 1, 1], [], []>} : vector<8x32xbf16>, vector<32x64xbf16>, vector<8x64xf32> -> vector<8x64xf32>
    %c0_51 = arith.constant 0 : index
    %c0_52 = arith.constant 0 : index
    %128 = vector.load %arg9[%c0_51, %c0_52] : memref<1x64xf32, #tpu.memory_space<vmem>>, vector<1x64xf32>
    %129 = vector.broadcast %128 : vector<1x64xf32> to vector<8x64xf32>
    %130 = arith.addf %127, %129 : vector<8x64xf32>
    %131 = arith.truncf %130 : vector<8x64xf32> to vector<8x64xbf16>
    %c0_53 = arith.constant 0 : index
    %c0_54 = arith.constant 0 : index
    %132 = vector.load %arg10[%c0_53, %c0_54] : memref<64x32xbf16, #tpu.memory_space<vmem>>, vector<64x32xbf16>
    %cst_55 = arith.constant dense<0.000000e+00> : vector<8x32xf32>
    %133 = tpu.matmul %131, %132, %cst_55 {dimension_numbers = #tpu.dot_dimension_numbers<[1], [0], [0], [1], [0, 0, 1, 1], [], []>} : vector<8x64xbf16>, vector<64x32xbf16>, vector<8x32xf32> -> vector<8x32xf32>
    %c0_56 = arith.constant 0 : index
    %c0_57 = arith.constant 0 : index
    %134 = vector.load %arg11[%c0_56, %c0_57] : memref<1x32xf32, #tpu.memory_space<vmem>>, vector<1x32xf32>
    %135 = vector.broadcast %134 : vector<1x32xf32> to vector<8x32xf32>
    %136 = arith.addf %133, %135 : vector<8x32xf32>
    %137 = arith.addf %124, %136 : vector<8x32xf32>
    %cst_58 = arith.constant dense<0.000000e+00> : vector<8xf32>
    %138 = vector.multi_reduction <add>, %137, %cst_58 [1] : vector<8x32xf32> to vector<8xf32>
    %139 = vector.shape_cast %138 : vector<8xf32> to vector<8x1xf32>
    %cst_59 = arith.constant 3.200000e+01 : f32
    %140 = vector.broadcast %cst_59 : f32 to vector<8x1xf32>
    %141 = arith.divf %139, %140 : vector<8x1xf32>
    %142 = vector.broadcast %141 : vector<8x1xf32> to vector<8x32xf32>
    %143 = arith.subf %137, %142 : vector<8x32xf32>
    %144 = vector.broadcast %141 : vector<8x1xf32> to vector<8x32xf32>
    %145 = arith.subf %137, %144 : vector<8x32xf32>
    %146 = arith.mulf %143, %145 : vector<8x32xf32>
    %cst_60 = arith.constant dense<0.000000e+00> : vector<8xf32>
    %147 = vector.multi_reduction <add>, %146, %cst_60 [1] : vector<8x32xf32> to vector<8xf32>
    %148 = vector.shape_cast %147 : vector<8xf32> to vector<8x1xf32>
    %cst_61 = arith.constant 3.200000e+01 : f32
    %149 = vector.broadcast %cst_61 : f32 to vector<8x1xf32>
    %150 = arith.divf %148, %149 : vector<8x1xf32>
    %151 = vector.broadcast %141 : vector<8x1xf32> to vector<8x32xf32>
    %152 = arith.subf %137, %151 : vector<8x32xf32>
    %cst_62 = arith.constant 9.99999974E-6 : f32
    %153 = vector.broadcast %cst_62 : f32 to vector<8x1xf32>
    %154 = arith.addf %150, %153 : vector<8x1xf32>
    %155 = math.rsqrt %154 : vector<8x1xf32>
    %156 = vector.broadcast %155 : vector<8x1xf32> to vector<8x32xf32>
    %157 = arith.mulf %152, %156 : vector<8x32xf32>
    %c0_63 = arith.constant 0 : index
    %c0_64 = arith.constant 0 : index
    %158 = vector.load %arg12[%c0_63, %c0_64] : memref<1x32xf32, #tpu.memory_space<vmem>>, vector<1x32xf32>
    %159 = vector.broadcast %158 : vector<1x32xf32> to vector<8x32xf32>
    %160 = arith.mulf %157, %159 : vector<8x32xf32>
    %c0_65 = arith.constant 0 : index
    %c0_66 = arith.constant 0 : index
    %161 = vector.load %arg13[%c0_65, %c0_66] : memref<1x32xf32, #tpu.memory_space<vmem>>, vector<1x32xf32>
    %162 = vector.broadcast %161 : vector<1x32xf32> to vector<8x32xf32>
    %163 = arith.addf %160, %162 : vector<8x32xf32>
    %164 = arith.negf %163 : vector<8x32xf32>
    %165 = math.exp %164 : vector<8x32xf32>
    %cst_67 = arith.constant 1.000000e+00 : f32
    %166 = vector.broadcast %cst_67 : f32 to vector<8x32xf32>
    %167 = arith.addf %166, %165 : vector<8x32xf32>
    %168 = arith.divf %166, %167 : vector<8x32xf32>
    %169 = arith.mulf %163, %168 : vector<8x32xf32>
    %c0_68 = arith.constant 0 : index
    %c0_69 = arith.constant 0 : index
    %170 = vector.load %arg14[%c0_68, %c0_69] : memref<8x32xf32, #tpu.memory_space<vmem>>, vector<8x32xf32>
    tpu.vector_store %arg14[%c0_68, %c0_69], %169 {strides = array<i32>} : memref<8x32xf32, #tpu.memory_space<vmem>>, vector<8x32xf32>,
    return
  }
  func.func @transform_0(%arg0: i32) -> (i32, i32) {
    %c0_i32 = arith.constant 0 : i32
    %c0_i32_0 = arith.constant 0 : i32
    return %arg0, %c0_i32 : i32, i32
  }
  func.func @transform_1(%arg0: i32) -> (i32, i32) {
    %c0_i32 = arith.constant 0 : i32
    %c0_i32_0 = arith.constant 0 : i32
    %c0_i32_1 = arith.constant 0 : i32
    return %c0_i32, %c0_i32_0 : i32, i32
  }
  func.func @transform_2(%arg0: i32) -> (i32, i32) {
    %c0_i32 = arith.constant 0 : i32
    %c0_i32_0 = arith.constant 0 : i32
    %c0_i32_1 = arith.constant 0 : i32
    return %c0_i32, %c0_i32_0 : i32, i32
  }
  func.func @transform_3(%arg0: i32) -> (i32, i32) {
    %c0_i32 = arith.constant 0 : i32
    %c0_i32_0 = arith.constant 0 : i32
    %c0_i32_1 = arith.constant 0 : i32
    return %c0_i32, %c0_i32_0 : i32, i32
  }
  func.func @transform_4(%arg0: i32) -> (i32, i32) {
    %c0_i32 = arith.constant 0 : i32
    %c0_i32_0 = arith.constant 0 : i32
    %c0_i32_1 = arith.constant 0 : i32
    return %c0_i32, %c0_i32_0 : i32, i32
  }
  func.func @transform_5(%arg0: i32) -> (i32, i32) {
    %c0_i32 = arith.constant 0 : i32
    %c0_i32_0 = arith.constant 0 : i32
    %c0_i32_1 = arith.constant 0 : i32
    return %c0_i32, %c0_i32_0 : i32, i32
  }
  func.func @transform_6(%arg0: i32) -> (i32, i32) {
    %c0_i32 = arith.constant 0 : i32
    %c0_i32_0 = arith.constant 0 : i32
    %c0_i32_1 = arith.constant 0 : i32
    return %c0_i32, %c0_i32_0 : i32, i32
  }
  func.func @transform_7(%arg0: i32) -> (i32, i32) {
    %c0_i32 = arith.constant 0 : i32
    %c0_i32_0 = arith.constant 0 : i32
    %c0_i32_1 = arith.constant 0 : i32
    return %c0_i32, %c0_i32_0 : i32, i32
  }
  func.func @transform_8(%arg0: i32) -> (i32, i32) {
    %c0_i32 = arith.constant 0 : i32
    %c0_i32_0 = arith.constant 0 : i32
    %c0_i32_1 = arith.constant 0 : i32
    return %c0_i32, %c0_i32_0 : i32, i32
  }
  func.func @transform_9(%arg0: i32) -> (i32, i32) {
    %c0_i32 = arith.constant 0 : i32
    %c0_i32_0 = arith.constant 0 : i32
    %c0_i32_1 = arith.constant 0 : i32
    return %c0_i32, %c0_i32_0 : i32, i32
  }
  func.func @transform_10(%arg0: i32) -> (i32, i32) {
    %c0_i32 = arith.constant 0 : i32
    %c0_i32_0 = arith.constant 0 : i32
    %c0_i32_1 = arith.constant 0 : i32
    return %c0_i32, %c0_i32_0 : i32, i32
  }
  func.func @transform_11(%arg0: i32) -> (i32, i32) {
    %c0_i32 = arith.constant 0 : i32
    %c0_i32_0 = arith.constant 0 : i32
    %c0_i32_1 = arith.constant 0 : i32
    return %c0_i32, %c0_i32_0 : i32, i32
  }
  func.func @transform_12(%arg0: i32) -> (i32, i32) {
    %c0_i32 = arith.constant 0 : i32
    %c0_i32_0 = arith.constant 0 : i32
    %c0_i32_1 = arith.constant 0 : i32
    return %c0_i32, %c0_i32_0 : i32, i32
  }
  func.func @transform_13(%arg0: i32) -> (i32, i32) {
    %c0_i32 = arith.constant 0 : i32
    %c0_i32_0 = arith.constant 0 : i32
    return %arg0, %c0_i32 : i32, i32
  }
}

</mosaic_0001>

<llo_original>
// kernel: tpu_custom_call.1
$region0: #{tpu_custom_call.1}
  #allocation0 [shape = 'u32[]', space=smem, size = 0x4, offset = 0x4, fixed_abs, tag = 'smem constant byte address 0x4 - core index']
  #allocation1 [shape = 'u32[144,128]{1,0:T(1,128)}', space=vmem, size = 0x12000, scoped, tag = 'internal scratch']
  #allocation2 [shape = 'f32[1,8,32]{2,1,0:T(8,128)}', space=vmem, size = 0x1000, scoped, tag = 'scratch operand']
  %s0 = inlined_call_operand.vmem [shape: f32[16,32], index: 0, kind: input, shape index: {}]
  %s1 = inlined_call_operand.vmem [shape: bf16[32,96], index: 1, kind: input, shape index: {}]
  %s2 = inlined_call_operand.hbm [shape: f32[1,96], index: 2, kind: input, shape index: {}]
  %s3 = inlined_call_operand.vmem [shape: bf16[32,32], index: 3, kind: input, shape index: {}]
  %s4 = inlined_call_operand.hbm [shape: f32[1,32], index: 4, kind: input, shape index: {}]
  %s5 = inlined_call_operand.hbm [shape: f32[1,32], index: 5, kind: input, shape index: {}]
  %s6 = inlined_call_operand.hbm [shape: f32[1,32], index: 6, kind: input, shape index: {}]
  %s7 = inlined_call_operand.hbm [shape: bf16[32,64], index: 7, kind: input, shape index: {}]
  %s8 = inlined_call_operand.hbm [shape: f32[1,64], index: 8, kind: input, shape index: {}]
  %s9 = inlined_call_operand.vmem [shape: bf16[64,32], index: 9, kind: input, shape index: {}]
  %s10 = inlined_call_operand.vmem [shape: f32[1,32], index: 10, kind: input, shape index: {}]
  %s11 = inlined_call_operand.vmem [shape: f32[1,32], index: 11, kind: input, shape index: {}]
  %s12 = inlined_call_operand.vmem [shape: f32[1,32], index: 12, kind: input, shape index: {}]
  %s13 = inlined_call_operand.hbm [shape: f32[16,32], index: 13, kind: output, shape index: {}]
  %s14 = sld [smem:[#allocation0]]
  $region109: #{tpu_custom_call.1} parent=0
    _
  %s16 = ssub.s32 1, %s14
  %s17 = scalar_select 0, %s16, %s14
  $region1: #{tpu_custom_call.1} parent=0
    #allocation3 [shape = 'u8[512]{0}', space=vmem, size = 0x400, scoped, tag = 'input window, operand 2, single buffered']
    #allocation4 [shape = 's32[2]{0}', space=sflag, size = 0x8, scoped, tag = 'scoped memory for tpu_custom_call.1']
    #allocation5 [shape = 's32[2]{0}', space=sflag, size = 0x8, scoped, tag = 'scoped memory for tpu_custom_call.1']
    #allocation6 [shape = 'u8[512]{0}', space=vmem, size = 0x400, scoped, tag = 'input window, operand 4, single buffered']
    #allocation7 [shape = 's32[1]{0}', space=sflag, size = 0x4, scoped, tag = 'scoped memory for tpu_custom_call.1']
    #allocation8 [shape = 'u8[512]{0}', space=vmem, size = 0x400, scoped, tag = 'input window, operand 5, single buffered']
    #allocation9 [shape = 'u8[512]{0}', space=vmem, size = 0x400, scoped, tag = 'input window, operand 6, single buffered']
    #allocation10 [shape = 's32[1]{0}', space=sflag, size = 0x4, scoped, tag = 'scoped memory for tpu_custom_call.1']
    #allocation11 [shape = 'u8[8192]{0}', space=vmem, size = 0x2000, scoped, tag = 'input window, operand 7, single buffered']
    #allocation12 [shape = 'u8[512]{0}', space=vmem, size = 0x400, scoped, tag = 'input window, operand 8, single buffered']
    #allocation13 [shape = 's32[1]{0}', space=sflag, size = 0x4, scoped, tag = 'scoped memory for tpu_custom_call.1']
    #allocation14 [shape = 'u8[8192]{0}', space=vmem, size = 0x2000, scoped, tag = 'output window, operand 0']
    %18 = vsyncpa [#allocation4], 0
    %19 = vsyncpa [#allocation7], 0
    %20 = vsyncpa [#allocation10], 0
    %21 = vsyncpa [#allocation13], 0
    %22 = vsyncpa [#allocation5], 0
    %s23 = scalar_lea.sflag [#allocation5], 1
    %24 = vsyncpa %s23, 0
    loop: start=0, step=1, limit=4
    $region2: #{tpu_custom_call.1} parent=1 // loop_pre_header
      _
    $region3: #{tpu_custom_call.1} parent=1 // loop_header
      %s26 = sphi 0, %s30
      %p27 = scmp.ge.s32.totalorder %s26, 4
      %s36 = sphi 0, %s38
      %s39 = sphi 0, %s36
      %s40 = sphi 0, %s39
      %s56 = sphi 0, %s40
      %s60 = sphi 0, %s60
      %s62 = sphi 0, %s60
      %s63 = sphi 0, %s62
      %s77 = sphi 0, %s63
      %s81 = sphi 0, %s81
      %s83 = sphi 0, %s81
      %s84 = sphi 0, %s83
      %s98 = sphi 0, %s84
      %s102 = sphi 0, %s102
      %s104 = sphi 0, %s102
      %s105 = sphi 0, %s104
      %s119 = sphi 0, %s105
      %s123 = sphi 0, %s123
      %s125 = sphi 0, %s123
      %s126 = sphi 0, %s125
      %s140 = sphi 0, %s126
      %s144 = sphi 0, %s144
      %s146 = sphi 0, %s144
      %s147 = sphi 0, %s146
      %s161 = sphi 0, %s147
      %s165 = sphi 0, %s165
      %s167 = sphi 0, %s165
      %s168 = sphi 0, %s167
      %s182 = sphi 0, %s168
      %s186 = sphi 0, %s186
      %s188 = sphi 0, %s186
      %s189 = sphi 0, %s188
      %s203 = sphi 0, %s189
      %s207 = sphi 0, %s207
      %s209 = sphi 0, %s207
      %s210 = sphi 0, %s209
      %s224 = sphi 0, %s210
      %s228 = sphi 0, %s228
      %s230 = sphi 0, %s228
      %s231 = sphi 0, %s230
      %s245 = sphi 0, %s231
      %s249 = sphi 0, %s249
      %s251 = sphi 0, %s249
      %s252 = sphi 0, %s251
      %s266 = sphi 0, %s252
      %s270 = sphi 0, %s270
      %s272 = sphi 0, %s270
      %s273 = sphi 0, %s272
      %s287 = sphi 0, %s273
      %s291 = sphi 0, %s291
      %s293 = sphi 0, %s291
      %s294 = sphi 0, %s293
      %s308 = sphi 0, %s294
      %s314 = sphi 0, %s316
      %s317 = sphi 0, %s314
      %s318 = sphi 0, %s317
      %s334 = sphi 0, %s318
    $region4: #{tpu_custom_call.1} parent=1 // loop_header_branch
      %29 = sbr.rel (%p27) target = $region8
    $region5: #{tpu_custom_call.1} parent=1 // loop_body
      %s31 = ssub.s32 %s26, 1
      %s32 = ssub.s32 %s26, 2
      %s33 = sadd.s32 %s26, 1
      %s34 = ssub.s32 %s26, %s33
      %p35 = scmp.eq.s32.totalorder %s34, 0
      %s37 = sadd.s32 %s36, 1
      %s38 = scalar_select %p35, %s36, %s37
      %p41 = pneg %p35
      %p42 = scmp.eq.s32.totalorder %s26, 1
      %p43 = por %p41, %p42
      %p44 = scmp.ne.s32.totalorder %s36, %s39
      %p45 = scmp.eq.s32.totalorder %s26, 0
      %p46 = por %p44, %p45
      %p47 = scmp.ne.s32.totalorder %s36, %s39
      %p48 = scmp.eq.s32.totalorder %s31, 1
      %p49 = por %p47, %p48
      %p50 = scmp.ne.s32.totalorder %s39, %s40
      %p51 = scmp.eq.s32.totalorder %s31, 0
      %p52 = por %p50, %p51
      %p53 = scmp.ne.s32.totalorder %s39, %s40
      %p54 = scmp.eq.s32.totalorder %s32, 1
      %p55 = por %p53, %p54
      %p57 = scmp.ne.s32.totalorder %s40, %s56
      %p58 = scmp.eq.s32.totalorder %s32, 0
      %p59 = por %p57, %p58
      %s61 = sadd.s32 %s60, 1
      %p64 = scmp.eq.s32.totalorder %s26, 1
      %p65 = scmp.ne.s32.totalorder %s60, %s62
      %p66 = scmp.eq.s32.totalorder %s26, 0
      %p67 = por %p65, %p66
      %p68 = scmp.ne.s32.totalorder %s60, %s62
      %p69 = scmp.eq.s32.totalorder %s31, 1
      %p70 = por %p68, %p69
      %p71 = scmp.ne.s32.totalorder %s62, %s63
      %p72 = scmp.eq.s32.totalorder %s31, 0
      %p73 = por %p71, %p72
      %p74 = scmp.ne.s32.totalorder %s62, %s63
      %p75 = scmp.eq.s32.totalorder %s32, 1
      %p76 = por %p74, %p75
      %p78 = scmp.ne.s32.totalorder %s63, %s77
      %p79 = scmp.eq.s32.totalorder %s32, 0
      %p80 = por %p78, %p79
      %s82 = sadd.s32 %s81, 1
      %p85 = scmp.eq.s32.totalorder %s26, 1
      %p86 = scmp.ne.s32.totalorder %s81, %s83
      %p87 = scmp.eq.s32.totalorder %s26, 0
      %p88 = por %p86, %p87
      %p89 = scmp.ne.s32.totalorder %s81, %s83
      %p90 = scmp.eq.s32.totalorder %s31, 1
      %p91 = por %p89, %p90
      %p92 = scmp.ne.s32.totalorder %s83, %s84
      %p93 = scmp.eq.s32.totalorder %s31, 0
      %p94 = por %p92, %p93
      %p95 = scmp.ne.s32.totalorder %s83, %s84
      %p96 = scmp.eq.s32.totalorder %s32, 1
      %p97 = por %p95, %p96
      %p99 = scmp.ne.s32.totalorder %s84, %s98
      %p100 = scmp.eq.s32.totalorder %s32, 0
      %p101 = por %p99, %p100
      %s103 = sadd.s32 %s102, 1
      %p106 = scmp.eq.s32.totalorder %s26, 1
      %p107 = scmp.ne.s32.totalorder %s102, %s104
      %p108 = scmp.eq.s32.totalorder %s26, 0
      %p109 = por %p107, %p108
      %p110 = scmp.ne.s32.totalorder %s102, %s104
      %p111 = scmp.eq.s32.totalorder %s31, 1
      %p112 = por %p110, %p111
      %p113 = scmp.ne.s32.totalorder %s104, %s105
      %p114 = scmp.eq.s32.totalorder %s31, 0
      %p115 = por %p113, %p114
      %p116 = scmp.ne.s32.totalorder %s104, %s105
      %p117 = scmp.eq.s32.totalorder %s32, 1
      %p118 = por %p116, %p117
      %p120 = scmp.ne.s32.totalorder %s105, %s119
      %p121 = scmp.eq.s32.totalorder %s32, 0
      %p122 = por %p120, %p121
      %s124 = sadd.s32 %s123, 1
      %p127 = scmp.eq.s32.totalorder %s26, 1
      %p128 = scmp.ne.s32.totalorder %s123, %s125
      %p129 = scmp.eq.s32.totalorder %s26, 0
      %p130 = por %p128, %p129
      %p131 = scmp.ne.s32.totalorder %s123, %s125
      %p132 = scmp.eq.s32.totalorder %s31, 1
      %p133 = por %p131, %p132
      %p134 = scmp.ne.s32.totalorder %s125, %s126
      %p135 = scmp.eq.s32.totalorder %s31, 0
      %p136 = por %p134, %p135
      %p137 = scmp.ne.s32.totalorder %s125, %s126
      %p138 = scmp.eq.s32.totalorder %s32, 1
      %p139 = por %p137, %p138
      %p141 = scmp.ne.s32.totalorder %s126, %s140
      %p142 = scmp.eq.s32.totalorder %s32, 0
      %p143 = por %p141, %p142
      %s145 = sadd.s32 %s144, 1
      %p148 = scmp.eq.s32.totalorder %s26, 1
      %p149 = scmp.ne.s32.totalorder %s144, %s146
      %p150 = scmp.eq.s32.totalorder %s26, 0
      %p151 = por %p149, %p150
      %p152 = scmp.ne.s32.totalorder %s144, %s146
      %p153 = scmp.eq.s32.totalorder %s31, 1
      %p154 = por %p152, %p153
      %p155 = scmp.ne.s32.totalorder %s146, %s147
      %p156 = scmp.eq.s32.totalorder %s31, 0
      %p157 = por %p155, %p156
      %p158 = scmp.ne.s32.totalorder %s146, %s147
      %p159 = scmp.eq.s32.totalorder %s32, 1
      %p160 = por %p158, %p159
      %p162 = scmp.ne.s32.totalorder %s147, %s161
      %p163 = scmp.eq.s32.totalorder %s32, 0
      %p164 = por %p162, %p163
      %s166 = sadd.s32 %s165, 1
      %p169 = scmp.eq.s32.totalorder %s26, 1
      %p170 = scmp.ne.s32.totalorder %s165, %s167
      %p171 = scmp.eq.s32.totalorder %s26, 0
      %p172 = por %p170, %p171
      %p173 = scmp.ne.s32.totalorder %s165, %s167
      %p174 = scmp.eq.s32.totalorder %s31, 1
      %p175 = por %p173, %p174
      %p176 = scmp.ne.s32.totalorder %s167, %s168
      %p177 = scmp.eq.s32.totalorder %s31, 0
      %p178 = por %p176, %p177
      %p179 = scmp.ne.s32.totalorder %s167, %s168
      %p180 = scmp.eq.s32.totalorder %s32, 1
      %p181 = por %p179, %p180
      %p183 = scmp.ne.s32.totalorder %s168, %s182
      %p184 = scmp.eq.s32.totalorder %s32, 0
      %p185 = por %p183, %p184
      %s187 = sadd.s32 %s186, 1
      %p190 = scmp.eq.s32.totalorder %s26, 1
      %p191 = scmp.ne.s32.totalorder %s186, %s188
      %p192 = scmp.eq.s32.totalorder %s26, 0
      %p193 = por %p191, %p192
      %p194 = scmp.ne.s32.totalorder %s186, %s188
      %p195 = scmp.eq.s32.totalorder %s31, 1
      %p196 = por %p194, %p195
      %p197 = scmp.ne.s32.totalorder %s188, %s189
      %p198 = scmp.eq.s32.totalorder %s31, 0
      %p199 = por %p197, %p198
      %p200 = scmp.ne.s32.totalorder %s188, %s189
      %p201 = scmp.eq.s32.totalorder %s32, 1
      %p202 = por %p200, %p201
      %p204 = scmp.ne.s32.totalorder %s189, %s203
      %p205 = scmp.eq.s32.totalorder %s32, 0
      %p206 = por %p204, %p205
      %s208 = sadd.s32 %s207, 1
      %p211 = scmp.eq.s32.totalorder %s26, 1
      %p212 = scmp.ne.s32.totalorder %s207, %s209
      %p213 = scmp.eq.s32.totalorder %s26, 0
      %p214 = por %p212, %p213
      %p215 = scmp.ne.s32.totalorder %s207, %s209
      %p216 = scmp.eq.s32.totalorder %s31, 1
      %p217 = por %p215, %p216
      %p218 = scmp.ne.s32.totalorder %s209, %s210
      %p219 = scmp.eq.s32.totalorder %s31, 0
      %p220 = por %p218, %p219
      %p221 = scmp.ne.s32.totalorder %s209, %s210
      %p222 = scmp.eq.s32.totalorder %s32, 1
      %p223 = por %p221, %p222
      %p225 = scmp.ne.s32.totalorder %s210, %s224
      %p226 = scmp.eq.s32.totalorder %s32, 0
      %p227 = por %p225, %p226
      %s229 = sadd.s32 %s228, 1
      %p232 = scmp.eq.s32.totalorder %s26, 1
      %p233 = scmp.ne.s32.totalorder %s228, %s230
      %p234 = scmp.eq.s32.totalorder %s26, 0
      %p235 = por %p233, %p234
      %p236 = scmp.ne.s32.totalorder %s228, %s230
      %p237 = scmp.eq.s32.totalorder %s31, 1
      %p238 = por %p236, %p237
      %p239 = scmp.ne.s32.totalorder %s230, %s231
      %p240 = scmp.eq.s32.totalorder %s31, 0
      %p241 = por %p239, %p240
      %p242 = scmp.ne.s32.totalorder %s230, %s231
      %p243 = scmp.eq.s32.totalorder %s32, 1
      %p244 = por %p242, %p243
      %p246 = scmp.ne.s32.totalorder %s231, %s245
      %p247 = scmp.eq.s32.totalorder %s32, 0
      %p248 = por %p246, %p247
      %s250 = sadd.s32 %s249, 1
      %p253 = scmp.eq.s32.totalorder %s26, 1
      %p254 = scmp.ne.s32.totalorder %s249, %s251
      %p255 = scmp.eq.s32.totalorder %s26, 0
      %p256 = por %p254, %p255
      %p257 = scmp.ne.s32.totalorder %s249, %s251
      %p258 = scmp.eq.s32.totalorder %s31, 1
      %p259 = por %p257, %p258
      %p260 = scmp.ne.s32.totalorder %s251, %s252
      %p261 = scmp.eq.s32.totalorder %s31, 0
      %p262 = por %p260, %p261
      %p263 = scmp.ne.s32.totalorder %s251, %s252
      %p264 = scmp.eq.s32.totalorder %s32, 1
      %p265 = por %p263, %p264
      %p267 = scmp.ne.s32.totalorder %s252, %s266
      %p268 = scmp.eq.s32.totalorder %s32, 0
      %p269 = por %p267, %p268
      %s271 = sadd.s32 %s270, 1
      %p274 = scmp.eq.s32.totalorder %s26, 1
      %p275 = scmp.ne.s32.totalorder %s270, %s272
      %p276 = scmp.eq.s32.totalorder %s26, 0
      %p277 = por %p275, %p276
      %p278 = scmp.ne.s32.totalorder %s270, %s272
      %p279 = scmp.eq.s32.totalorder %s31, 1
      %p280 = por %p278, %p279
      %p281 = scmp.ne.s32.totalorder %s272, %s273
      %p282 = scmp.eq.s32.totalorder %s31, 0
      %p283 = por %p281, %p282
      %p284 = scmp.ne.s32.totalorder %s272, %s273
      %p285 = scmp.eq.s32.totalorder %s32, 1
      %p286 = por %p284, %p285
      %p288 = scmp.ne.s32.totalorder %s273, %s287
      %p289 = scmp.eq.s32.totalorder %s32, 0
      %p290 = por %p288, %p289
      %s292 = sadd.s32 %s291, 1
      %p295 = scmp.eq.s32.totalorder %s26, 1
      %p296 = scmp.ne.s32.totalorder %s291, %s293
      %p297 = scmp.eq.s32.totalorder %s26, 0
      %p298 = por %p296, %p297
      %p299 = scmp.ne.s32.totalorder %s291, %s293
      %p300 = scmp.eq.s32.totalorder %s31, 1
      %p301 = por %p299, %p300
      %p302 = scmp.ne.s32.totalorder %s293, %s294
      %p303 = scmp.eq.s32.totalorder %s31, 0
      %p304 = por %p302, %p303
      %p305 = scmp.ne.s32.totalorder %s293, %s294
      %p306 = scmp.eq.s32.totalorder %s32, 1
      %p307 = por %p305, %p306
      %p309 = scmp.ne.s32.totalorder %s294, %s308
      %p310 = scmp.eq.s32.totalorder %s32, 0
      %p311 = por %p309, %p310
      %s312 = ssub.s32 %s26, %s33
      %p313 = scmp.eq.s32.totalorder %s312, 0
      %s315 = sadd.s32 %s314, 1
      %s316 = scalar_select %p313, %s314, %s315
      %p319 = pneg %p313
      %p320 = scmp.eq.s32.totalorder %s26, 1
      %p321 = por %p319, %p320
      %p322 = scmp.ne.s32.totalorder %s314, %s317
      %p323 = scmp.eq.s32.totalorder %s26, 0
      %p324 = por %p322, %p323
      %p325 = scmp.ne.s32.totalorder %s314, %s317
      %p326 = scmp.eq.s32.totalorder %s31, 1
      %p327 = por %p325, %p326
      %p328 = scmp.ne.s32.totalorder %s317, %s318
      %p329 = scmp.eq.s32.totalorder %s31, 0
      %p330 = por %p328, %p329
      %p331 = scmp.ne.s32.totalorder %s317, %s318
      %p332 = scmp.eq.s32.totalorder %s32, 1
      %p333 = por %p331, %p332
      %p335 = scmp.ne.s32.totalorder %s318, %s334
      %p336 = scmp.eq.s32.totalorder %s32, 0
      %p337 = por %p335, %p336
      %p338 = scmp.le.s32.totalorder 1, %s26
      %p339 = scmp.lt.s32.totalorder %s26, 3
      %p340 = pnand %p338, %p339
      %p341 = pneg %p340
      // Predicated region
      $region9: #{tpu_custom_call.1} parent=5 // pred_check
        _
      $region10: #{tpu_custom_call.1} parent=5 // pred_check_branch
        %343 = sbr.rel (%p340) target = $region12
      $region11: #{tpu_custom_call.1} parent=5 // pred_region
        %s344 = ssub.s32 %s26, 1
        // Predicated region
        $region13: #{tpu_custom_call.1} parent=11 // pred_check
          %p345 = pneg %p73
        $region14: #{tpu_custom_call.1} parent=11 // pred_check_branch
          %347 = sbr.rel (%p345) target = $region16
        $region15: #{tpu_custom_call.1} parent=11 // pred_region
          _
        $region16: #{tpu_custom_call.1} parent=11 // pred_fallthru
          _
        // Predicated region
        $region17: #{tpu_custom_call.1} parent=11 // pred_check
          %p348 = pneg %p94
        $region18: #{tpu_custom_call.1} parent=11 // pred_check_branch
          %350 = sbr.rel (%p348) target = $region20
        $region19: #{tpu_custom_call.1} parent=11 // pred_region
          %s352 = ssub.s32 16, 16
          %353 = vsyncadd [#allocation4], %s352
          %s355 = sshll.u32 [#allocation3], 4
          %s356 = int_to_ptr.vmem [resolvable:$true] %s355
          %358 = dma.hbm_to_vmem [thread:$0]  %s2, 16, %s356, [#allocation4]
        $region20: #{tpu_custom_call.1} parent=11 // pred_fallthru
          _
        // Predicated region
        $region21: #{tpu_custom_call.1} parent=11 // pred_check
          %p359 = pneg %p115
        $region22: #{tpu_custom_call.1} parent=11 // pred_check_branch
          %361 = sbr.rel (%p359) target = $region24
        $region23: #{tpu_custom_call.1} parent=11 // pred_region
          _
        $region24: #{tpu_custom_call.1} parent=11 // pred_fallthru
          _
        // Predicated region
        $region25: #{tpu_custom_call.1} parent=11 // pred_check
          %p362 = pneg %p136
        $region26: #{tpu_custom_call.1} parent=11 // pred_check_branch
          %364 = sbr.rel (%p362) target = $region28
        $region27: #{tpu_custom_call.1} parent=11 // pred_region
          %s366 = ssub.s32 16, 16
          %367 = vsyncadd [#allocation7], %s366
          %s369 = sshll.u32 [#allocation6], 4
          %s370 = int_to_ptr.vmem [resolvable:$true] %s369
          %372 = dma.hbm_to_vmem [thread:$0]  %s4, 16, %s370, [#allocation7]
        $region28: #{tpu_custom_call.1} parent=11 // pred_fallthru
          _
        // Predicated region
        $region29: #{tpu_custom_call.1} parent=11 // pred_check
          %p373 = pneg %p157
        $region30: #{tpu_custom_call.1} parent=11 // pred_check_branch
          %375 = sbr.rel (%p373) target = $region32
        $region31: #{tpu_custom_call.1} parent=11 // pred_region
          %s377 = ssub.s32 16, 16
          %378 = vsyncadd [#allocation7], %s377
          %s380 = sshll.u32 [#allocation8], 4
          %s381 = int_to_ptr.vmem [resolvable:$true] %s380
          %383 = dma.hbm_to_vmem [thread:$0]  %s5, 16, %s381, [#allocation7]
        $region32: #{tpu_custom_call.1} parent=11 // pred_fallthru
          _
        // Predicated region
        $region33: #{tpu_custom_call.1} parent=11 // pred_check
          %p384 = pneg %p178
        $region34: #{tpu_custom_call.1} parent=11 // pred_check_branch
          %386 = sbr.rel (%p384) target = $region36
        $region35: #{tpu_custom_call.1} parent=11 // pred_region
          %s388 = ssub.s32 16, 16
          %389 = vsyncadd [#allocation10], %s388
          %s391 = sshll.u32 [#allocation9], 4
          %s392 = int_to_ptr.vmem [resolvable:$true] %s391
          %394 = dma.hbm_to_vmem [thread:$0]  %s6, 16, %s392, [#allocation10]
        $region36: #{tpu_custom_call.1} parent=11 // pred_fallthru
          _
        // Predicated region
        $region37: #{tpu_custom_call.1} parent=11 // pred_check
          %p395 = pneg %p199
        $region38: #{tpu_custom_call.1} parent=11 // pred_check_branch
          %397 = sbr.rel (%p395) target = $region40
        $region39: #{tpu_custom_call.1} parent=11 // pred_region
          %s399 = ssub.s32 256, 256
          %400 = vsyncadd [#allocation10], %s399
          %s401 = sshll.u32 [#allocation11], 4
          %s402 = int_to_ptr.vmem [resolvable:$true] %s401
          %407 = dma.hbm_to_vmem [thread:$0]  %s7, 256, %s402, [#allocation10], 64, 64, 4
        $region40: #{tpu_custom_call.1} parent=11 // pred_fallthru
          _
        // Predicated region
        $region41: #{tpu_custom_call.1} parent=11 // pred_check
          %p408 = pneg %p220
        $region42: #{tpu_custom_call.1} parent=11 // pred_check_branch
          %410 = sbr.rel (%p408) target = $region44
        $region43: #{tpu_custom_call.1} parent=11 // pred_region
          %s412 = ssub.s32 16, 16
          %413 = vsyncadd [#allocation13], %s412
          %s415 = sshll.u32 [#allocation12], 4
          %s416 = int_to_ptr.vmem [resolvable:$true] %s415
          %418 = dma.hbm_to_vmem [thread:$0]  %s8, 16, %s416, [#allocation13]
        $region44: #{tpu_custom_call.1} parent=11 // pred_fallthru
          _
        // Predicated region
        $region45: #{tpu_custom_call.1} parent=11 // pred_check
          %p419 = pneg %p241
        $region46: #{tpu_custom_call.1} parent=11 // pred_check_branch
          %421 = sbr.rel (%p419) target = $region48
        $region47: #{tpu_custom_call.1} parent=11 // pred_region
          _
        $region48: #{tpu_custom_call.1} parent=11 // pred_fallthru
          _
        // Predicated region
        $region49: #{tpu_custom_call.1} parent=11 // pred_check
          %p422 = pneg %p262
        $region50: #{tpu_custom_call.1} parent=11 // pred_check_branch
          %424 = sbr.rel (%p422) target = $region52
        $region51: #{tpu_custom_call.1} parent=11 // pred_region
          _
        $region52: #{tpu_custom_call.1} parent=11 // pred_fallthru
          _
        // Predicated region
        $region53: #{tpu_custom_call.1} parent=11 // pred_check
          %p425 = pneg %p283
        $region54: #{tpu_custom_call.1} parent=11 // pred_check_branch
          %427 = sbr.rel (%p425) target = $region56
        $region55: #{tpu_custom_call.1} parent=11 // pred_region
          _
        $region56: #{tpu_custom_call.1} parent=11 // pred_fallthru
          _
        // Predicated region
        $region57: #{tpu_custom_call.1} parent=11 // pred_check
          %p428 = pneg %p304
        $region58: #{tpu_custom_call.1} parent=11 // pred_check_branch
          %430 = sbr.rel (%p428) target = $region60
        $region59: #{tpu_custom_call.1} parent=11 // pred_region
          _
        $region60: #{tpu_custom_call.1} parent=11 // pred_fallthru
          _
      $region12: #{tpu_custom_call.1} parent=5 // pred_fallthru
        _
      %p431 = scmp.lt.s32.totalorder %s26, 2
      // Predicated region
      $region61: #{tpu_custom_call.1} parent=5 // pred_check
        %p432 = pneg %p431
      $region62: #{tpu_custom_call.1} parent=5 // pred_check_branch
        %434 = sbr.rel (%p432) target = $region64
      $region63: #{tpu_custom_call.1} parent=5 // pred_region
        // Predicated region
        $region65: #{tpu_custom_call.1} parent=63 // pred_check
          %p435 = pneg %p46
        $region66: #{tpu_custom_call.1} parent=63 // pred_check_branch
          %437 = sbr.rel (%p435) target = $region68
        $region67: #{tpu_custom_call.1} parent=63 // pred_region
          %p438 = scmp.lt.s32.totalorder %s26, 1
          %s439 = scalar_select %p438, %s26, 1
          %s440 = smul.addr %s439, 8
          %s441 = scalar_lea.vmem %s0, %s440
        $region68: #{tpu_custom_call.1} parent=63 // pred_fallthru
          _
      $region64: #{tpu_custom_call.1} parent=5 // pred_fallthru
        _
      %p442 = scmp.le.s32.totalorder 1, %s26
      %p443 = scmp.lt.s32.totalorder %s26, 3
      %p444 = pnand %p442, %p443
      %p445 = pneg %p444
      // Predicated region
      $region69: #{tpu_custom_call.1} parent=5 // pred_check
        _
      $region70: #{tpu_custom_call.1} parent=5 // pred_check_branch
        %447 = sbr.rel (%p444) target = $region72
      $region71: #{tpu_custom_call.1} parent=5 // pred_region
        %s448 = ssub.s32 %s26, 1
        // Predicated region
        $region73: #{tpu_custom_call.1} parent=71 // pred_check
          %p449 = pneg %p94
        $region74: #{tpu_custom_call.1} parent=71 // pred_check_branch
          %451 = sbr.rel (%p449) target = $region76
        $region75: #{tpu_custom_call.1} parent=71 // pred_region
          %452 = dma.done [#allocation4], 16
        $region76: #{tpu_custom_call.1} parent=71 // pred_fallthru
          _
        // Predicated region
        $region77: #{tpu_custom_call.1} parent=71 // pred_check
          %p453 = pneg %p136
        $region78: #{tpu_custom_call.1} parent=71 // pred_check_branch
          %455 = sbr.rel (%p453) target = $region80
        $region79: #{tpu_custom_call.1} parent=71 // pred_region
          %456 = dma.done [#allocation7], 16
        $region80: #{tpu_custom_call.1} parent=71 // pred_fallthru
          _
        // Predicated region
        $region81: #{tpu_custom_call.1} parent=71 // pred_check
          %p457 = pneg %p157
        $region82: #{tpu_custom_call.1} parent=71 // pred_check_branch
          %459 = sbr.rel (%p457) target = $region84
        $region83: #{tpu_custom_call.1} parent=71 // pred_region
          %460 = dma.done [#allocation7], 16
        $region84: #{tpu_custom_call.1} parent=71 // pred_fallthru
          _
        // Predicated region
        $region85: #{tpu_custom_call.1} parent=71 // pred_check
          %p461 = pneg %p178
        $region86: #{tpu_custom_call.1} parent=71 // pred_check_branch
          %463 = sbr.rel (%p461) target = $region88
        $region87: #{tpu_custom_call.1} parent=71 // pred_region
          %464 = dma.done [#allocation10], 16
        $region88: #{tpu_custom_call.1} parent=71 // pred_fallthru
          _
        // Predicated region
        $region89: #{tpu_custom_call.1} parent=71 // pred_check
          %p465 = pneg %p199
        $region90: #{tpu_custom_call.1} parent=71 // pred_check_branch
          %467 = sbr.rel (%p465) target = $region92
        $region91: #{tpu_custom_call.1} parent=71 // pred_region
          %468 = dma.done [#allocation10], 256
        $region92: #{tpu_custom_call.1} parent=71 // pred_fallthru
          _
        // Predicated region
        $region93: #{tpu_custom_call.1} parent=71 // pred_check
          %p469 = pneg %p220
        $region94: #{tpu_custom_call.1} parent=71 // pred_check_branch
          %471 = sbr.rel (%p469) target = $region96
        $region95: #{tpu_custom_call.1} parent=71 // pred_region
          %472 = dma.done [#allocation13], 16
        $region96: #{tpu_custom_call.1} parent=71 // pred_fallthru
          _
        %p473 = scmp.lt.s32.totalorder %s31, 1
        %s474 = scalar_select %p473, %s31, 1
        %s475 = smul.addr %s474, 8
        %s476 = scalar_lea.vmem %s0, %s475
        %p477 = pneg %p52
        %p478 = pneg %p49
        %p479 = pneg %p73
        %p480 = pneg %p70
        %p481 = pneg %p94
        %p482 = pneg %p91
        %p483 = pneg %p115
        %p484 = pneg %p112
        %p485 = pneg %p136
        %p486 = pneg %p133
        %p487 = pneg %p157
        %p488 = pneg %p154
        %p489 = pneg %p178
        %p490 = pneg %p175
        %p491 = pneg %p199
        %p492 = pneg %p196
        %p493 = pneg %p220
        %p494 = pneg %p217
        %p495 = pneg %p241
        %p496 = pneg %p238
        %p497 = pneg %p262
        %p498 = pneg %p259
        %p499 = pneg %p283
        %p500 = pneg %p280
        %p501 = pneg %p304
        %p502 = pneg %p301
        %p503 = pneg %p330
        %p504 = pneg %p327
        %s505 = sand.u32 %s317, 1
        %s506 = scalar_lea.sflag [#allocation5], %s505
        %s507 = sand.u32 %s317, 1
        %s508 = smul.addr %s507, 8
        %s509 = scalar_lea.vmem [#allocation14], %s508
        %p510 = scmp.lt.s32.totalorder %s31, 1
        %s511 = scalar_select %p510, %s31, 1
        %s512 = smul.addr %s511, 8
        %s513 = scalar_lea.vmem %s0, %s512
        %v515 = vld [vmem:[%s513] sm:$0xff]
        %v516 = vpack.c.bf16 %v515, %v515
        %v517 = vld [vmem:[%s1] sm:$0xf]
        %v518 = vld [vmem:[%s1 + $0x4] sm:$0xf]
        %v519 = vld [vmem:[%s1 + $0x8] sm:$0xf]
        %v520 = vld [vmem:[%s1 + $0xc] sm:$0xf]
        %v521 = vld [vmem:[#allocation3] sm:$0x1]
        %v523 = vlaneseq
        %v524 = vshrl.u32 %v523, 7
        %v525 = vsub.s32 0, %v524
        %v526 = vrot.slane %v521, %v525
        %v532 = vunpack.c.l.b16 %v517
        %v533 = vunpack.c.l.b16 %v518
        %v534 = vunpack.c.l.b16 %v519
        %v535 = vunpack.c.l.b16 %v520
        %v536 = vpack.c.b16 %v533, %v532
        %v537 = vpack.c.b16 %v535, %v534
        %vm540 = vcmask 261120
        %v542 = vsel %vm540, %v516, 0
        %544 = vmatprep.subr.bf16.mxu0 0
        %545 = vmatpush1.bf16.msra.mxu0 0
        %546 = vmatprep.subr.bf16.mxu0 0
        %547 = vmatpush1.bf16.msra.mxu0 0
        %548 = vmatprep.subr.bf16.mxu0 0
        %549 = vmatpush1.bf16.msra.mxu0 0
        %550 = vmatprep.subr.bf16.mxu0 0
        %551 = vmatpush1.bf16.msra.mxu0 0
        %552 = vmatprep.subr.bf16.mxu0 0
        %553 = vmatpush1.bf16.msra.mxu0 0
        %554 = vmatprep.subr.bf16.mxu0 0
        %555 = vmatpush1.bf16.msra.mxu0 0
        %556 = vmatprep.subr.bf16.mxu0 0
        %557 = vmatpush1.bf16.msra.mxu0 %v537
        %558 = vmatprep.subr.bf16.mxu0 0
        %559 = vmatpush1.bf16.msra.mxu0 %v536
        %560 = vmatprep.subr.bf16.mxu0 0
        %561 = vmatpush2.bf16.msra.mxu0 0
        %562 = vmatprep.subr.bf16.mxu0 0
        %563 = vmatpush2.bf16.msra.mxu0 0
        %564 = vmatprep.subr.bf16.mxu0 0
        %565 = vmatpush2.bf16.msra.mxu0 0
        %566 = vmatprep.subr.bf16.mxu0 0
        %567 = vmatpush2.bf16.msra.mxu0 0
        %568 = vmatprep.subr.bf16.mxu0 0
        %569 = vmatpush2.bf16.msra.mxu0 0
        %570 = vmatprep.subr.bf16.mxu0 0
        %571 = vmatpush2.bf16.msra.mxu0 0
        %572 = vmatprep.subr.bf16.mxu0 0
        %573 = vmatpush2.bf16.msra.mxu0 0
        %574 = vmatprep.subr.bf16.mxu0 0
        %575 = vmatpush2.bf16.msra.mxu0 0
        %576 = vmatprep.mubr.bf16.mxu0 0
        %577 = vmatmul.mubr.bf16.gmra.mxu0 %v542
        %v578 = vpop.f32.mrf.mxu0
        %v579 = vadd.f32 %v526, %v578
        %v580 = vpop.f32.mrf.mxu0
        %v581 = vpop.f32.mrf.mxu0
        %v582 = vpop.f32.mrf.mxu0
        %583 = vdwg.mxu0
        %v584 = vpack.c.bf16 %v579, %v579
        %586 = vrot.lane.b32.xlu0 %v584, 96
        %v587 = vpop.permute.xlu0 %586
        %vm588 = vcmask 64512
        %v590 = vsel %vm588, %v584, 0
        %v593 = vsel %vm588, %v587, 0
        %595 = vmatprep.subr.bf16.mxu0 0
        %596 = vmatpush1.bf16.xpose.msra.mxu0 0
        %597 = vmatprep.subr.bf16.mxu0 0
        %598 = vmatpush1.bf16.xpose.msra.mxu0 0
        %599 = vmatprep.subr.bf16.mxu0 0
        %600 = vmatpush1.bf16.xpose.msra.mxu0 0
        %601 = vmatprep.subr.bf16.mxu0 0
        %602 = vmatpush1.bf16.xpose.msra.mxu0 0
        %603 = vmatprep.subr.bf16.mxu0 0
        %604 = vmatpush1.bf16.xpose.msra.mxu0 0
        %605 = vmatprep.subr.bf16.mxu0 0
        %606 = vmatpush1.bf16.xpose.msra.mxu0 0
        %607 = vmatprep.subr.bf16.mxu0 0
        %608 = vmatpush1.bf16.xpose.msra.mxu0 0
        %609 = vmatprep.subr.bf16.mxu0 0
        %610 = vmatpush1.bf16.xpose.msra.mxu0 %v593
        %611 = vmatprep.subr.bf16.mxu0 0
        %612 = vmatpush2.bf16.xpose.msra.mxu0 0
        %613 = vmatprep.subr.bf16.mxu0 0
        %614 = vmatpush2.bf16.xpose.msra.mxu0 0
        %615 = vmatprep.subr.bf16.mxu0 0
        %616 = vmatpush2.bf16.xpose.msra.mxu0 0
        %617 = vmatprep.subr.bf16.mxu0 0
        %618 = vmatpush2.bf16.xpose.msra.mxu0 0
        %619 = vmatprep.subr.bf16.mxu0 0
        %620 = vmatpush2.bf16.xpose.msra.mxu0 0
        %621 = vmatprep.subr.bf16.mxu0 0
        %622 = vmatpush2.bf16.xpose.msra.mxu0 0
        %623 = vmatprep.subr.bf16.mxu0 0
        %624 = vmatpush2.bf16.xpose.msra.mxu0 0
        %625 = vmatprep.subr.bf16.mxu0 0
        %626 = vmatpush2.bf16.xpose.msra.mxu0 0
        %627 = vmatprep.mubr.bf16.mxu0 0
        %628 = vmatmul.mubr.bf16.gmra.mxu0 %v590
        %v629 = vpop.f32.mrf.mxu0
        %v630 = vadd.f32 0.0, %v629
        %v631 = vpop.f32.mrf.mxu0
        %v632 = vpop.f32.mrf.mxu0
        %v633 = vpop.f32.mrf.mxu0
        %634 = vdwg.mxu0
        %v635 = vsel %vm588, %v630, -inf
        %636 = vmax.xlane.f32.xlu0 %v635
        %v637 = vpop.xlane.xlu0 %636
        %v638 = vsub.f32 %v630, %v637
        %v639 = vmul.f32 %v638, 1.442695
        %v640 = vpow.pop %v639
        %v641 = vsel %vm588, %v640, 0.0
        %642 = vadd.xlane.f32.xlu0 %v641
        %v643 = vpop.xlane.xlu0 %642
        %v644 = vpack.c.bf16 %v640, %v640
        %645 = vrot.lane.b32.xlu0 %v584, 64
        %v646 = vpop.permute.xlu0 %645
        %v648 = vsel %vm588, %v644, 0
        %vm650 = vcmask 1043456
        %v652 = vsel %vm650, %v646, 0
        %654 = vmatprep.subr.bf16.mxu0 0
        %655 = vmatpush1.bf16.msra.mxu0 0
        %656 = vmatprep.subr.bf16.mxu0 0
        %657 = vmatpush1.bf16.msra.mxu0 0
        %658 = vmatprep.subr.bf16.mxu0 0
        %659 = vmatpush1.bf16.msra.mxu0 0
        %660 = vmatprep.subr.bf16.mxu0 0
        %661 = vmatpush1.bf16.msra.mxu0 0
        %662 = vmatprep.subr.bf16.mxu0 0
        %663 = vmatpush1.bf16.msra.mxu0 0
        %664 = vmatprep.subr.bf16.mxu0 0
        %665 = vmatpush1.bf16.msra.mxu0 0
        %666 = vmatprep.subr.bf16.mxu0 0
        %667 = vmatpush1.bf16.msra.mxu0 0
        %668 = vmatprep.subr.bf16.mxu0 0
        %669 = vmatpush1.bf16.msra.mxu0 %v652
        %670 = vmatprep.subr.bf16.mxu0 0
        %671 = vmatpush2.bf16.msra.mxu0 0
        %672 = vmatprep.subr.bf16.mxu0 0
        %673 = vmatpush2.bf16.msra.mxu0 0
        %674 = vmatprep.subr.bf16.mxu0 0
        %675 = vmatpush2.bf16.msra.mxu0 0
        %676 = vmatprep.subr.bf16.mxu0 0
        %677 = vmatpush2.bf16.msra.mxu0 0
        %678 = vmatprep.subr.bf16.mxu0 0
        %679 = vmatpush2.bf16.msra.mxu0 0
        %680 = vmatprep.subr.bf16.mxu0 0
        %681 = vmatpush2.bf16.msra.mxu0 0
        %682 = vmatprep.subr.bf16.mxu0 0
        %683 = vmatpush2.bf16.msra.mxu0 0
        %684 = vmatprep.subr.bf16.mxu0 0
        %685 = vmatpush2.bf16.msra.mxu0 0
        %686 = vmatprep.mubr.bf16.mxu0 0
        %687 = vmatmul.mubr.bf16.gmra.mxu0 %v648
        %v688 = vpop.f32.mrf.mxu0
        %v689 = vadd.f32 0.0, %v688
        %v690 = vpop.f32.mrf.mxu0
        %v691 = vpop.f32.mrf.mxu0
        %v692 = vpop.f32.mrf.mxu0
        %693 = vdwg.mxu0
        %v694 = vrcp.pop %v643
        %v695 = vmul.f32 %v689, %v694
        %696 = vst.msk [vmem:[#allocation2] sm:$0xff] %vm588, %v695
        %697 = vrot.lane.b32.xlu0 %v584, 120
        %v698 = vpop.permute.xlu0 %697
        %699 = vrot.lane.b32.xlu0 %v584, 88
        %v700 = vpop.permute.xlu0 %699
        %v702 = vsel %vm588, %v698, 0
        %v705 = vsel %vm588, %v700, 0
        %707 = vmatprep.subr.bf16.mxu0 0
        %708 = vmatpush1.bf16.xpose.msra.mxu0 0
        %709 = vmatprep.subr.bf16.mxu0 0
        %710 = vmatpush1.bf16.xpose.msra.mxu0 0
        %711 = vmatprep.subr.bf16.mxu0 0
        %712 = vmatpush1.bf16.xpose.msra.mxu0 0
        %713 = vmatprep.subr.bf16.mxu0 0
        %714 = vmatpush1.bf16.xpose.msra.mxu0 0
        %715 = vmatprep.subr.bf16.mxu0 0
        %716 = vmatpush1.bf16.xpose.msra.mxu0 0
        %717 = vmatprep.subr.bf16.mxu0 0
        %718 = vmatpush1.bf16.xpose.msra.mxu0 0
        %719 = vmatprep.subr.bf16.mxu0 0
        %720 = vmatpush1.bf16.xpose.msra.mxu0 0
        %721 = vmatprep.subr.bf16.mxu0 0
        %722 = vmatpush1.bf16.xpose.msra.mxu0 %v705
        %723 = vmatprep.subr.bf16.mxu0 0
        %724 = vmatpush2.bf16.xpose.msra.mxu0 0
        %725 = vmatprep.subr.bf16.mxu0 0
        %726 = vmatpush2.bf16.xpose.msra.mxu0 0
        %727 = vmatprep.subr.bf16.mxu0 0
        %728 = vmatpush2.bf16.xpose.msra.mxu0 0
        %729 = vmatprep.subr.bf16.mxu0 0
        %730 = vmatpush2.bf16.xpose.msra.mxu0 0
        %731 = vmatprep.subr.bf16.mxu0 0
        %732 = vmatpush2.bf16.xpose.msra.mxu0 0
        %733 = vmatprep.subr.bf16.mxu0 0
        %734 = vmatpush2.bf16.xpose.msra.mxu0 0
        %735 = vmatprep.subr.bf16.mxu0 0
        %736 = vmatpush2.bf16.xpose.msra.mxu0 0
        %737 = vmatprep.subr.bf16.mxu0 0
        %738 = vmatpush2.bf16.xpose.msra.mxu0 0
        %739 = vmatprep.mubr.bf16.mxu0 0
        %740 = vmatmul.mubr.bf16.gmra.mxu0 %v702
        %v741 = vpop.f32.mrf.mxu0
        %v742 = vadd.f32 0.0, %v741
        %v743 = vpop.f32.mrf.mxu0
        %v744 = vpop.f32.mrf.mxu0
        %v745 = vpop.f32.mrf.mxu0
        %746 = vdwg.mxu0
        %v747 = vsel %vm588, %v742, -inf
        %748 = vmax.xlane.f32.xlu0 %v747
        %v749 = vpop.xlane.xlu0 %748
        %v750 = vsub.f32 %v742, %v749
        %v751 = vmul.f32 %v750, 1.442695
        %v752 = vpow.pop %v751
        %v753 = vsel %vm588, %v752, 0.0
        %754 = vadd.xlane.f32.xlu0 %v753
        %v755 = vpop.xlane.xlu0 %754
        %v756 = vpack.c.bf16 %v752, %v752
        %757 = vrot.lane.b32.xlu0 %v584, 56
        %v758 = vpop.permute.xlu0 %757
        %v760 = vsel %vm588, %v756, 0
        %v763 = vsel %vm650, %v758, 0
        %765 = vmatprep.subr.bf16.mxu0 0
        %766 = vmatpush1.bf16.msra.mxu0 0
        %767 = vmatprep.subr.bf16.mxu0 0
        %768 = vmatpush1.bf16.msra.mxu0 0
        %769 = vmatprep.subr.bf16.mxu0 0
        %770 = vmatpush1.bf16.msra.mxu0 0
        %771 = vmatprep.subr.bf16.mxu0 0
        %772 = vmatpush1.bf16.msra.mxu0 0
        %773 = vmatprep.subr.bf16.mxu0 0
        %774 = vmatpush1.bf16.msra.mxu0 0
        %775 = vmatprep.subr.bf16.mxu0 0
        %776 = vmatpush1.bf16.msra.mxu0 0
        %777 = vmatprep.subr.bf16.mxu0 0
        %778 = vmatpush1.bf16.msra.mxu0 0
        %779 = vmatprep.subr.bf16.mxu0 0
        %780 = vmatpush1.bf16.msra.mxu0 %v763
        %781 = vmatprep.subr.bf16.mxu0 0
        %782 = vmatpush2.bf16.msra.mxu0 0
        %783 = vmatprep.subr.bf16.mxu0 0
        %784 = vmatpush2.bf16.msra.mxu0 0
        %785 = vmatprep.subr.bf16.mxu0 0
        %786 = vmatpush2.bf16.msra.mxu0 0
        %787 = vmatprep.subr.bf16.mxu0 0
        %788 = vmatpush2.bf16.msra.mxu0 0
        %789 = vmatprep.subr.bf16.mxu0 0
        %790 = vmatpush2.bf16.msra.mxu0 0
        %791 = vmatprep.subr.bf16.mxu0 0
        %792 = vmatpush2.bf16.msra.mxu0 0
        %793 = vmatprep.subr.bf16.mxu0 0
        %794 = vmatpush2.bf16.msra.mxu0 0
        %795 = vmatprep.subr.bf16.mxu0 0
        %796 = vmatpush2.bf16.msra.mxu0 0
        %797 = vmatprep.mubr.bf16.mxu0 0
        %798 = vmatmul.mubr.bf16.gmra.mxu0 %v760
        %v799 = vpop.f32.mrf.mxu0
        %v800 = vadd.f32 0.0, %v799
        %v801 = vpop.f32.mrf.mxu0
        %v802 = vpop.f32.mrf.mxu0
        %v803 = vpop.f32.mrf.mxu0
        %804 = vdwg.mxu0
        %v805 = vrcp.pop %v755
        %v806 = vmul.f32 %v800, %v805
        %808 = vrot.lane.b32.xlu0 %v806, 8
        %v809 = vpop.permute.xlu0 %808
        %vm811 = vcmask 130112
        %812 = vst.msk [vmem:[#allocation2] sm:$0xff] %vm811, %v809
        %813 = vrot.lane.b32.xlu0 %v584, 112
        %v814 = vpop.permute.xlu0 %813
        %815 = vrot.lane.b32.xlu0 %v584, 80
        %v816 = vpop.permute.xlu0 %815
        %v818 = vsel %vm588, %v814, 0
        %v821 = vsel %vm588, %v816, 0
        %823 = vmatprep.subr.bf16.mxu0 0
        %824 = vmatpush1.bf16.xpose.msra.mxu0 0
        %825 = vmatprep.subr.bf16.mxu0 0
        %826 = vmatpush1.bf16.xpose.msra.mxu0 0
        %827 = vmatprep.subr.bf16.mxu0 0
        %828 = vmatpush1.bf16.xpose.msra.mxu0 0
        %829 = vmatprep.subr.bf16.mxu0 0
        %830 = vmatpush1.bf16.xpose.msra.mxu0 0
        %831 = vmatprep.subr.bf16.mxu0 0
        %832 = vmatpush1.bf16.xpose.msra.mxu0 0
        %833 = vmatprep.subr.bf16.mxu0 0
        %834 = vmatpush1.bf16.xpose.msra.mxu0 0
        %835 = vmatprep.subr.bf16.mxu0 0
        %836 = vmatpush1.bf16.xpose.msra.mxu0 0
        %837 = vmatprep.subr.bf16.mxu0 0
        %838 = vmatpush1.bf16.xpose.msra.mxu0 %v821
        %839 = vmatprep.subr.bf16.mxu0 0
        %840 = vmatpush2.bf16.xpose.msra.mxu0 0
        %841 = vmatprep.subr.bf16.mxu0 0
        %842 = vmatpush2.bf16.xpose.msra.mxu0 0
        %843 = vmatprep.subr.bf16.mxu0 0
        %844 = vmatpush2.bf16.xpose.msra.mxu0 0
        %845 = vmatprep.subr.bf16.mxu0 0
        %846 = vmatpush2.bf16.xpose.msra.mxu0 0
        %847 = vmatprep.subr.bf16.mxu0 0
        %848 = vmatpush2.bf16.xpose.msra.mxu0 0
        %849 = vmatprep.subr.bf16.mxu0 0
        %850 = vmatpush2.bf16.xpose.msra.mxu0 0
        %851 = vmatprep.subr.bf16.mxu0 0
        %852 = vmatpush2.bf16.xpose.msra.mxu0 0
        %853 = vmatprep.subr.bf16.mxu0 0
        %854 = vmatpush2.bf16.xpose.msra.mxu0 0
        %855 = vmatprep.mubr.bf16.mxu0 0
        %856 = vmatmul.mubr.bf16.gmra.mxu0 %v818
        %v857 = vpop.f32.mrf.mxu0
        %v858 = vadd.f32 0.0, %v857
        %v859 = vpop.f32.mrf.mxu0
        %v860 = vpop.f32.mrf.mxu0
        %v861 = vpop.f32.mrf.mxu0
        %862 = vdwg.mxu0
        %v863 = vsel %vm588, %v858, -inf
        %864 = vmax.xlane.f32.xlu0 %v863
        %v865 = vpop.xlane.xlu0 %864
        %v866 = vsub.f32 %v858, %v865
        %v867 = vmul.f32 %v866, 1.442695
        %v868 = vpow.pop %v867
        %v869 = vsel %vm588, %v868, 0.0
        %870 = vadd.xlane.f32.xlu0 %v869
        %v871 = vpop.xlane.xlu0 %870
        %v872 = vpack.c.bf16 %v868, %v868
        %873 = vrot.lane.b32.xlu0 %v584, 48
        %v874 = vpop.permute.xlu0 %873
        %v876 = vsel %vm588, %v872, 0
        %v879 = vsel %vm650, %v874, 0
        %881 = vmatprep.subr.bf16.mxu0 0
        %882 = vmatpush1.bf16.msra.mxu0 0
        %883 = vmatprep.subr.bf16.mxu0 0
        %884 = vmatpush1.bf16.msra.mxu0 0
        %885 = vmatprep.subr.bf16.mxu0 0
        %886 = vmatpush1.bf16.msra.mxu0 0
        %887 = vmatprep.subr.bf16.mxu0 0
        %888 = vmatpush1.bf16.msra.mxu0 0
        %889 = vmatprep.subr.bf16.mxu0 0
        %890 = vmatpush1.bf16.msra.mxu0 0
        %891 = vmatprep.subr.bf16.mxu0 0
        %892 = vmatpush1.bf16.msra.mxu0 0
        %893 = vmatprep.subr.bf16.mxu0 0
        %894 = vmatpush1.bf16.msra.mxu0 0
        %895 = vmatprep.subr.bf16.mxu0 0
        %896 = vmatpush1.bf16.msra.mxu0 %v879
        %897 = vmatprep.subr.bf16.mxu0 0
        %898 = vmatpush2.bf16.msra.mxu0 0
        %899 = vmatprep.subr.bf16.mxu0 0
        %900 = vmatpush2.bf16.msra.mxu0 0
        %901 = vmatprep.subr.bf16.mxu0 0
        %902 = vmatpush2.bf16.msra.mxu0 0
        %903 = vmatprep.subr.bf16.mxu0 0
        %904 = vmatpush2.bf16.msra.mxu0 0
        %905 = vmatprep.subr.bf16.mxu0 0
        %906 = vmatpush2.bf16.msra.mxu0 0
        %907 = vmatprep.subr.bf16.mxu0 0
        %908 = vmatpush2.bf16.msra.mxu0 0
        %909 = vmatprep.subr.bf16.mxu0 0
        %910 = vmatpush2.bf16.msra.mxu0 0
        %911 = vmatprep.subr.bf16.mxu0 0
        %912 = vmatpush2.bf16.msra.mxu0 0
        %913 = vmatprep.mubr.bf16.mxu0 0
        %914 = vmatmul.mubr.bf16.gmra.mxu0 %v876
        %v915 = vpop.f32.mrf.mxu0
        %v916 = vadd.f32 0.0, %v915
        %v917 = vpop.f32.mrf.mxu0
        %v918 = vpop.f32.mrf.mxu0
        %v919 = vpop.f32.mrf.mxu0
        %920 = vdwg.mxu0
        %v921 = vrcp.pop %v871
        %v922 = vmul.f32 %v916, %v921
        %924 = vrot.lane.b32.xlu0 %v922, 16
        %v925 = vpop.permute.xlu0 %924
        %vm927 = vcmask 195712
        %928 = vst.msk [vmem:[#allocation2] sm:$0xff] %vm927, %v925
        %929 = vrot.lane.b32.xlu0 %v584, 104
        %v930 = vpop.permute.xlu0 %929
        %931 = vrot.lane.b32.xlu0 %v584, 72
        %v932 = vpop.permute.xlu0 %931
        %v934 = vsel %vm588, %v930, 0
        %v937 = vsel %vm588, %v932, 0
        %939 = vmatprep.subr.bf16.mxu0 0
        %940 = vmatpush1.bf16.xpose.msra.mxu0 0
        %941 = vmatprep.subr.bf16.mxu0 0
        %942 = vmatpush1.bf16.xpose.msra.mxu0 0
        %943 = vmatprep.subr.bf16.mxu0 0
        %944 = vmatpush1.bf16.xpose.msra.mxu0 0
        %945 = vmatprep.subr.bf16.mxu0 0
        %946 = vmatpush1.bf16.xpose.msra.mxu0 0
        %947 = vmatprep.subr.bf16.mxu0 0
        %948 = vmatpush1.bf16.xpose.msra.mxu0 0
        %949 = vmatprep.subr.bf16.mxu0 0
        %950 = vmatpush1.bf16.xpose.msra.mxu0 0
        %951 = vmatprep.subr.bf16.mxu0 0
        %952 = vmatpush1.bf16.xpose.msra.mxu0 0
        %953 = vmatprep.subr.bf16.mxu0 0
        %954 = vmatpush1.bf16.xpose.msra.mxu0 %v937
        %955 = vmatprep.subr.bf16.mxu0 0
        %956 = vmatpush2.bf16.xpose.msra.mxu0 0
        %957 = vmatprep.subr.bf16.mxu0 0
        %958 = vmatpush2.bf16.xpose.msra.mxu0 0
        %959 = vmatprep.subr.bf16.mxu0 0
        %960 = vmatpush2.bf16.xpose.msra.mxu0 0
        %961 = vmatprep.subr.bf16.mxu0 0
        %962 = vmatpush2.bf16.xpose.msra.mxu0 0
        %963 = vmatprep.subr.bf16.mxu0 0
        %964 = vmatpush2.bf16.xpose.msra.mxu0 0
        %965 = vmatprep.subr.bf16.mxu0 0
        %966 = vmatpush2.bf16.xpose.msra.mxu0 0
        %967 = vmatprep.subr.bf16.mxu0 0
        %968 = vmatpush2.bf16.xpose.msra.mxu0 0
        %969 = vmatprep.subr.bf16.mxu0 0
        %970 = vmatpush2.bf16.xpose.msra.mxu0 0
        %971 = vmatprep.mubr.bf16.mxu0 0
        %972 = vmatmul.mubr.bf16.gmra.mxu0 %v934
        %v973 = vpop.f32.mrf.mxu0
        %v974 = vadd.f32 0.0, %v973
        %v975 = vpop.f32.mrf.mxu0
        %v976 = vpop.f32.mrf.mxu0
        %v977 = vpop.f32.mrf.mxu0
        %978 = vdwg.mxu0
        %v979 = vsel %vm588, %v974, -inf
        %980 = vmax.xlane.f32.xlu0 %v979
        %v981 = vpop.xlane.xlu0 %980
        %v982 = vsub.f32 %v974, %v981
        %v983 = vmul.f32 %v982, 1.442695
        %v984 = vpow.pop %v983
        %v985 = vsel %vm588, %v984, 0.0
        %986 = vadd.xlane.f32.xlu0 %v985
        %v987 = vpop.xlane.xlu0 %986
        %v988 = vpack.c.bf16 %v984, %v984
        %989 = vrot.lane.b32.xlu0 %v584, 40
        %v990 = vpop.permute.xlu0 %989
        %v992 = vsel %vm588, %v988, 0
        %v995 = vsel %vm650, %v990, 0
        %997 = vmatprep.subr.bf16.mxu0 0
        %998 = vmatpush1.bf16.msra.mxu0 0
        %999 = vmatprep.subr.bf16.mxu0 0
        %1000 = vmatpush1.bf16.msra.mxu0 0
        %1001 = vmatprep.subr.bf16.mxu0 0
        %1002 = vmatpush1.bf16.msra.mxu0 0
        %1003 = vmatprep.subr.bf16.mxu0 0
        %1004 = vmatpush1.bf16.msra.mxu0 0
        %1005 = vmatprep.subr.bf16.mxu0 0
        %1006 = vmatpush1.bf16.msra.mxu0 0
        %1007 = vmatprep.subr.bf16.mxu0 0
        %1008 = vmatpush1.bf16.msra.mxu0 0
        %1009 = vmatprep.subr.bf16.mxu0 0
        %1010 = vmatpush1.bf16.msra.mxu0 0
        %1011 = vmatprep.subr.bf16.mxu0 0
        %1012 = vmatpush1.bf16.msra.mxu0 %v995
        %1013 = vmatprep.subr.bf16.mxu0 0
        %1014 = vmatpush2.bf16.msra.mxu0 0
        %1015 = vmatprep.subr.bf16.mxu0 0
        %1016 = vmatpush2.bf16.msra.mxu0 0
        %1017 = vmatprep.subr.bf16.mxu0 0
        %1018 = vmatpush2.bf16.msra.mxu0 0
        %1019 = vmatprep.subr.bf16.mxu0 0
        %1020 = vmatpush2.bf16.msra.mxu0 0
        %1021 = vmatprep.subr.bf16.mxu0 0
        %1022 = vmatpush2.bf16.msra.mxu0 0
        %1023 = vmatprep.subr.bf16.mxu0 0
        %1024 = vmatpush2.bf16.msra.mxu0 0
        %1025 = vmatprep.subr.bf16.mxu0 0
        %1026 = vmatpush2.bf16.msra.mxu0 0
        %1027 = vmatprep.subr.bf16.mxu0 0
        %1028 = vmatpush2.bf16.msra.mxu0 0
        %1029 = vmatprep.mubr.bf16.mxu0 0
        %1030 = vmatmul.mubr.bf16.gmra.mxu0 %v992
        %v1031 = vpop.f32.mrf.mxu0
        %v1032 = vadd.f32 0.0, %v1031
        %v1033 = vpop.f32.mrf.mxu0
        %v1034 = vpop.f32.mrf.mxu0
        %v1035 = vpop.f32.mrf.mxu0
        %1036 = vdwg.mxu0
        %v1037 = vrcp.pop %v987
        %v1038 = vmul.f32 %v1032, %v1037
        %1040 = vrot.lane.b32.xlu0 %v1038, 24
        %v1041 = vpop.permute.xlu0 %1040
        %vm1043 = vcmask 261312
        %1044 = vst.msk [vmem:[#allocation2] sm:$0xff] %vm1043, %v1041
        %v1045 = vld [vmem:[#allocation2] sm:$0xff]
        %v1046 = vpack.c.bf16 %v1045, %v1045
        %v1047 = vld [vmem:[%s3] sm:$0xf]
        %v1048 = vld [vmem:[%s3 + $0x4] sm:$0xf]
        %v1049 = vld [vmem:[%s3 + $0x8] sm:$0xf]
        %v1050 = vld [vmem:[%s3 + $0xc] sm:$0xf]
        %v1051 = vld [vmem:[#allocation6] sm:$0x1]
        %v1053 = vlaneseq
        %v1054 = vshrl.u32 %v1053, 7
        %v1055 = vsub.s32 0, %v1054
        %v1056 = vrot.slane %v1051, %v1055
        %v1062 = vunpack.c.l.b16 %v1047
        %v1063 = vunpack.c.l.b16 %v1048
        %v1064 = vunpack.c.l.b16 %v1049
        %v1065 = vunpack.c.l.b16 %v1050
        %v1066 = vpack.c.b16 %v1063, %v1062
        %v1067 = vpack.c.b16 %v1065, %v1064
        %v1071 = vsel %vm540, %v1046, 0
        %1073 = vmatprep.subr.bf16.mxu0 0
        %1074 = vmatpush1.bf16.msra.mxu0 0
        %1075 = vmatprep.subr.bf16.mxu0 0
        %1076 = vmatpush1.bf16.msra.mxu0 0
        %1077 = vmatprep.subr.bf16.mxu0 0
        %1078 = vmatpush1.bf16.msra.mxu0 0
        %1079 = vmatprep.subr.bf16.mxu0 0
        %1080 = vmatpush1.bf16.msra.mxu0 0
        %1081 = vmatprep.subr.bf16.mxu0 0
        %1082 = vmatpush1.bf16.msra.mxu0 0
        %1083 = vmatprep.subr.bf16.mxu0 0
        %1084 = vmatpush1.bf16.msra.mxu0 0
        %1085 = vmatprep.subr.bf16.mxu0 0
        %1086 = vmatpush1.bf16.msra.mxu0 %v1067
        %1087 = vmatprep.subr.bf16.mxu0 0
        %1088 = vmatpush1.bf16.msra.mxu0 %v1066
        %1089 = vmatprep.subr.bf16.mxu0 0
        %1090 = vmatpush2.bf16.msra.mxu0 0
        %1091 = vmatprep.subr.bf16.mxu0 0
        %1092 = vmatpush2.bf16.msra.mxu0 0
        %1093 = vmatprep.subr.bf16.mxu0 0
        %1094 = vmatpush2.bf16.msra.mxu0 0
        %1095 = vmatprep.subr.bf16.mxu0 0
        %1096 = vmatpush2.bf16.msra.mxu0 0
        %1097 = vmatprep.subr.bf16.mxu0 0
        %1098 = vmatpush2.bf16.msra.mxu0 0
        %1099 = vmatprep.subr.bf16.mxu0 0
        %1100 = vmatpush2.bf16.msra.mxu0 0
        %1101 = vmatprep.subr.bf16.mxu0 0
        %1102 = vmatpush2.bf16.msra.mxu0 0
        %1103 = vmatprep.subr.bf16.mxu0 0
        %1104 = vmatpush2.bf16.msra.mxu0 0
        %1105 = vmatprep.mubr.bf16.mxu0 0
        %1106 = vmatmul.mubr.bf16.gmra.mxu0 %v1071
        %v1107 = vpop.f32.mrf.mxu0
        %v1108 = vadd.f32 %v1056, %v1107
        %v1109 = vpop.f32.mrf.mxu0
        %v1110 = vpop.f32.mrf.mxu0
        %v1111 = vpop.f32.mrf.mxu0
        %1112 = vdwg.mxu0
        %v1113 = vmul.f32 %v1108, 2.0
        %v1114 = vadd.f32 %v515, %v1113
        %v1115 = vsel %vm540, %v1114, 0.0
        %1116 = vadd.xlane.f32.xlu0 %v1115
        %v1117 = vpop.xlane.xlu0 %1116
        %v1118 = vrcp.pop 32.0
        %v1119 = vmul.f32 %v1117, %v1118
        %v1120 = vsub.f32 %v1114, %v1119
        %v1121 = vmul.f32 %v1120, %v1120
        %v1122 = vsel %vm540, %v1121, 0.0
        %1123 = vadd.xlane.f32.xlu0 %v1122
        %v1124 = vpop.xlane.xlu0 %1123
        %v1125 = vmul.f32 %v1124, %v1118
        %v1126 = vadd.f32 %v1125, 1e-05
        %v1127 = vrsqrt.pop %v1126
        %v1128 = vmul.f32 %v1120, %v1127
        %v1129 = vld [vmem:[#allocation8] sm:$0x1]
        %v1131 = vlaneseq
        %v1132 = vshrl.u32 %v1131, 7
        %v1133 = vsub.s32 0, %v1132
        %v1134 = vrot.slane %v1129, %v1133
        %v1136 = vmul.f32 %v1128, %v1134
        %v1137 = vld [vmem:[#allocation9] sm:$0x1]
        %v1139 = vlaneseq
        %v1140 = vshrl.u32 %v1139, 7
        %v1141 = vsub.s32 0, %v1140
        %v1142 = vrot.slane %v1137, %v1141
        %v1144 = vadd.f32 %v1136, %v1142
        %v1145 = vpack.c.bf16 %v1144, %v1144
        %v1146 = vld [vmem:[#allocation11] sm:$0xf]
        %v1147 = vld [vmem:[#allocation11 + $0x4] sm:$0xf]
        %v1148 = vld [vmem:[#allocation11 + $0x8] sm:$0xf]
        %v1149 = vld [vmem:[#allocation11 + $0xc] sm:$0xf]
        %v1150 = vld [vmem:[#allocation12] sm:$0x1]
        %v1152 = vlaneseq
        %v1153 = vshrl.u32 %v1152, 7
        %v1154 = vsub.s32 0, %v1153
        %v1155 = vrot.slane %v1150, %v1154
        %v1161 = vunpack.c.l.b16 %v1146
        %v1162 = vunpack.c.l.b16 %v1147
        %v1163 = vunpack.c.l.b16 %v1148
        %v1164 = vunpack.c.l.b16 %v1149
        %v1165 = vpack.c.b16 %v1162, %v1161
        %v1166 = vpack.c.b16 %v1164, %v1163
        %v1170 = vsel %vm540, %v1145, 0
        %1172 = vmatprep.subr.bf16.mxu0 0
        %1173 = vmatpush1.bf16.msra.mxu0 0
        %1174 = vmatprep.subr.bf16.mxu0 0
        %1175 = vmatpush1.bf16.msra.mxu0 0
        %1176 = vmatprep.subr.bf16.mxu0 0
        %1177 = vmatpush1.bf16.msra.mxu0 0
        %1178 = vmatprep.subr.bf16.mxu0 0
        %1179 = vmatpush1.bf16.msra.mxu0 0
        %1180 = vmatprep.subr.bf16.mxu0 0
        %1181 = vmatpush1.bf16.msra.mxu0 0
        %1182 = vmatprep.subr.bf16.mxu0 0
        %1183 = vmatpush1.bf16.msra.mxu0 0
        %1184 = vmatprep.subr.bf16.mxu0 0
        %1185 = vmatpush1.bf16.msra.mxu0 %v1166
        %1186 = vmatprep.subr.bf16.mxu0 0
        %1187 = vmatpush1.bf16.msra.mxu0 %v1165
        %1188 = vmatprep.subr.bf16.mxu0 0
        %1189 = vmatpush2.bf16.msra.mxu0 0
        %1190 = vmatprep.subr.bf16.mxu0 0
        %1191 = vmatpush2.bf16.msra.mxu0 0
        %1192 = vmatprep.subr.bf16.mxu0 0
        %1193 = vmatpush2.bf16.msra.mxu0 0
        %1194 = vmatprep.subr.bf16.mxu0 0
        %1195 = vmatpush2.bf16.msra.mxu0 0
        %1196 = vmatprep.subr.bf16.mxu0 0
        %1197 = vmatpush2.bf16.msra.mxu0 0
        %1198 = vmatprep.subr.bf16.mxu0 0
        %1199 = vmatpush2.bf16.msra.mxu0 0
        %1200 = vmatprep.subr.bf16.mxu0 0
        %1201 = vmatpush2.bf16.msra.mxu0 0
        %1202 = vmatprep.subr.bf16.mxu0 0
        %1203 = vmatpush2.bf16.msra.mxu0 0
        %1204 = vmatprep.mubr.bf16.mxu0 0
        %1205 = vmatmul.mubr.bf16.gmra.mxu0 %v1170
        %v1206 = vpop.f32.mrf.mxu0
        %v1207 = vadd.f32 %v1155, %v1206
        %v1208 = vpop.f32.mrf.mxu0
        %v1209 = vpop.f32.mrf.mxu0
        %v1210 = vpop.f32.mrf.mxu0
        %1211 = vdwg.mxu0
        %v1212 = vpack.c.bf16 %v1207, %v1207
        %v1213 = vld [vmem:[%s9] sm:$0xf]
        %v1214 = vld [vmem:[%s9 + $0x4] sm:$0xf]
        %v1215 = vld [vmem:[%s9 + $0x8] sm:$0xf]
        %v1216 = vld [vmem:[%s9 + $0xc] sm:$0xf]
        %v1217 = vld [vmem:[%s9 + $0x10] sm:$0xf]
        %v1218 = vld [vmem:[%s9 + $0x14] sm:$0xf]
        %v1219 = vld [vmem:[%s9 + $0x18] sm:$0xf]
        %v1220 = vld [vmem:[%s9 + $0x1c] sm:$0xf]
        %v1221 = vld [vmem:[%s10] sm:$0x1]
        %v1223 = vlaneseq
        %v1224 = vshrl.u32 %v1223, 7
        %v1225 = vsub.s32 0, %v1224
        %v1226 = vrot.slane %v1221, %v1225
        %v1236 = vunpack.c.l.b16 %v1213
        %v1237 = vunpack.c.l.b16 %v1214
        %v1238 = vunpack.c.l.b16 %v1215
        %v1239 = vunpack.c.l.b16 %v1216
        %v1240 = vunpack.c.l.b16 %v1217
        %v1241 = vunpack.c.l.b16 %v1218
        %v1242 = vunpack.c.l.b16 %v1219
        %v1243 = vunpack.c.l.b16 %v1220
        %v1244 = vpack.c.b16 %v1237, %v1236
        %v1245 = vpack.c.b16 %v1239, %v1238
        %v1246 = vpack.c.b16 %v1241, %v1240
        %v1247 = vpack.c.b16 %v1243, %v1242
        %vm1252 = vcmask 523264
        %v1254 = vsel %vm1252, %v1212, 0
        %1256 = vmatprep.subr.bf16.mxu0 0
        %1257 = vmatpush1.bf16.msra.mxu0 0
        %1258 = vmatprep.subr.bf16.mxu0 0
        %1259 = vmatpush1.bf16.msra.mxu0 0
        %1260 = vmatprep.subr.bf16.mxu0 0
        %1261 = vmatpush1.bf16.msra.mxu0 0
        %1262 = vmatprep.subr.bf16.mxu0 0
        %1263 = vmatpush1.bf16.msra.mxu0 0
        %1264 = vmatprep.subr.bf16.mxu0 0
        %1265 = vmatpush1.bf16.msra.mxu0 %v1247
        %1266 = vmatprep.subr.bf16.mxu0 0
        %1267 = vmatpush1.bf16.msra.mxu0 %v1246
        %1268 = vmatprep.subr.bf16.mxu0 0
        %1269 = vmatpush1.bf16.msra.mxu0 %v1245
        %1270 = vmatprep.subr.bf16.mxu0 0
        %1271 = vmatpush1.bf16.msra.mxu0 %v1244
        %1272 = vmatprep.subr.bf16.mxu0 0
        %1273 = vmatpush2.bf16.msra.mxu0 0
        %1274 = vmatprep.subr.bf16.mxu0 0
        %1275 = vmatpush2.bf16.msra.mxu0 0
        %1276 = vmatprep.subr.bf16.mxu0 0
        %1277 = vmatpush2.bf16.msra.mxu0 0
        %1278 = vmatprep.subr.bf16.mxu0 0
        %1279 = vmatpush2.bf16.msra.mxu0 0
        %1280 = vmatprep.subr.bf16.mxu0 0
        %1281 = vmatpush2.bf16.msra.mxu0 0
        %1282 = vmatprep.subr.bf16.mxu0 0
        %1283 = vmatpush2.bf16.msra.mxu0 0
        %1284 = vmatprep.subr.bf16.mxu0 0
        %1285 = vmatpush2.bf16.msra.mxu0 0
        %1286 = vmatprep.subr.bf16.mxu0 0
        %1287 = vmatpush2.bf16.msra.mxu0 0
        %1288 = vmatprep.mubr.bf16.mxu0 0
        %1289 = vmatmul.mubr.bf16.gmra.mxu0 %v1254
        %v1290 = vpop.f32.mrf.mxu0
        %v1291 = vadd.f32 %v1226, %v1290
        %v1292 = vpop.f32.mrf.mxu0
        %v1293 = vpop.f32.mrf.mxu0
        %v1294 = vpop.f32.mrf.mxu0
        %1295 = vdwg.mxu0
        %v1296 = vadd.f32 %v1144, %v1291
        %v1297 = vsel %vm540, %v1296, 0.0
        %1298 = vadd.xlane.f32.xlu0 %v1297
        %v1299 = vpop.xlane.xlu0 %1298
        %v1300 = vmul.f32 %v1299, %v1118
        %v1301 = vsub.f32 %v1296, %v1300
        %v1302 = vmul.f32 %v1301, %v1301
        %v1303 = vsel %vm540, %v1302, 0.0
        %1304 = vadd.xlane.f32.xlu0 %v1303
        %v1305 = vpop.xlane.xlu0 %1304
        %v1306 = vmul.f32 %v1305, %v1118
        %v1307 = vadd.f32 %v1306, 1e-05
        %v1308 = vrsqrt.pop %v1307
        %v1309 = vmul.f32 %v1301, %v1308
        %v1310 = vld [vmem:[%s11] sm:$0x1]
        %v1312 = vlaneseq
        %v1313 = vshrl.u32 %v1312, 7
        %v1314 = vsub.s32 0, %v1313
        %v1315 = vrot.slane %v1310, %v1314
        %v1317 = vmul.f32 %v1309, %v1315
        %v1318 = vld [vmem:[%s12] sm:$0x1]
        %v1320 = vlaneseq
        %v1321 = vshrl.u32 %v1320, 7
        %v1322 = vsub.s32 0, %v1321
        %v1323 = vrot.slane %v1318, %v1322
        %v1325 = vadd.f32 %v1317, %v1323
        %v1326 = vxor.u32 %v1325, 2147483648
        %v1327 = vmul.f32 %v1326, 1.442695
        %v1328 = vpow.pop %v1327
        %v1329 = vadd.f32 %v1328, 1.0
        %v1330 = vrcp.pop %v1329
        %v1331 = vmul.f32 1.0, %v1330
        %v1332 = vmul.f32 %v1325, %v1331
        %1333 = vst.msk [vmem:[%s509] sm:$0xff] %vm540, %v1332
        %s1334 = sand.u32 %s317, 1
        %s1335 = scalar_lea.sflag [#allocation5], %s1334
        %s1336 = sand.u32 %s317, 1
        %s1337 = smul.addr %s1336, 8
        %s1338 = scalar_lea.vmem [#allocation14], %s1337
        // Predicated region
        $region97: #{tpu_custom_call.1} parent=71 // pred_check
          %p1339 = pneg %p327
        $region98: #{tpu_custom_call.1} parent=71 // pred_check_branch
          %1341 = sbr.rel (%p1339) target = $region100
        $region99: #{tpu_custom_call.1} parent=71 // pred_region
          %s1343 = ssub.s32 128, 128
          %1344 = vsyncadd %s1335, %s1343
          %s1345 = smul.addr %s31, 128
          %s1346 = scalar_lea.hbm %s13, %s1345
          %s1348 = sshll.u32 %s1338, 4
          %s1349 = int_to_ptr.vmem [resolvable:$true] %s1348
          %1351 = dma.vmem_to_hbm [thread:$0]  %s1349, 128, %s1346, %s1335
        $region100: #{tpu_custom_call.1} parent=71 // pred_fallthru
          _
      $region72: #{tpu_custom_call.1} parent=5 // pred_fallthru
        _
      %p1352 = scmp.le.s32.totalorder 2, %s26
      // Predicated region
      $region101: #{tpu_custom_call.1} parent=5 // pred_check
        %p1353 = pneg %p1352
      $region102: #{tpu_custom_call.1} parent=5 // pred_check_branch
        %1355 = sbr.rel (%p1353) target = $region104
      $region103: #{tpu_custom_call.1} parent=5 // pred_region
        %s1356 = ssub.s32 %s26, 2
        // Predicated region
        $region105: #{tpu_custom_call.1} parent=103 // pred_check
          %p1357 = pneg %p333
        $region106: #{tpu_custom_call.1} parent=103 // pred_check_branch
          %1359 = sbr.rel (%p1357) target = $region108
        $region107: #{tpu_custom_call.1} parent=103 // pred_region
          %s1360 = sand.u32 %s318, 1
          %s1361 = scalar_lea.sflag [#allocation5], %s1360
          %s1362 = sand.u32 %s318, 1
          %s1363 = smul.addr %s1362, 8
          %s1364 = scalar_lea.vmem [#allocation14], %s1363
          %1365 = dma.done %s1361, 128
        $region108: #{tpu_custom_call.1} parent=103 // pred_fallthru
          _
      $region104: #{tpu_custom_call.1} parent=5 // pred_fallthru
        _
    $region6: #{tpu_custom_call.1} parent=1 // loop_footer
      %s30 = sadd.s32 1, %s26
    $region7: #{tpu_custom_call.1} parent=1 // loop_footer_branch
      %25 = sbr.rel target = $region3
    $region8: #{tpu_custom_call.1} parent=1 // loop_exit
      _
    %1366 = vsyncpa [#allocation4], 1
    %s1367 = scalar_lea.sflag [#allocation4], 1
    %1368 = vsyncpa %s1367, 1
    %1369 = vsyncpa [#allocation7], 1
    %1370 = vsyncpa [#allocation10], 1
    %1371 = vsyncpa [#allocation13], 1
    %1372 = vsyncpa [#allocation5], 1
    %s1373 = scalar_lea.sflag [#allocation5], 1
    %1374 = vsyncpa %s1373, 1

</llo_original>
